<compile_context>
chip_gen: v6e
topology: v6e:2x2x1
jax: 0.10.0
libtpu: 0.0.40
codegen_flags: <defaults>
</compile_context>

<pallas_src>
import functools

import jax
import jax.numpy as jnp
from jax.experimental import pallas as pl
from jax.experimental.pallas import tpu as pltpu


def _round_up(x, m):
    return ((x + m - 1) // m) * m


def _llama_hidden_dim(dim, multiple_of=256):
    hidden_dim = 4 * dim
    hidden_dim = int(2 * hidden_dim / 3)
    hidden_dim = multiple_of * ((hidden_dim + multiple_of - 1) // multiple_of)
    return hidden_dim


def _device_vmem_bytes():
    """Physical VMEM of the attached TPU (fallback: 128 MiB, v5e/v6e)."""
    try:
        return int(pltpu.get_tpu_info().vmem_capacity_bytes)
    except Exception:
        return 128 * 1024 * 1024


def choose_tiles(M, dim, hidden, vmem_cap=None):
    """Pick (tm, th) from the device VMEM budget and the HBM/MXU roofline.

    Weights (wgu + wd) are re-streamed from HBM once per M tile, so the
    per-tile arithmetic intensity is ~tm flops/byte: tm must clear the
    roofline knee (~640 f/B on v6e, ~311 f/B per-TC on v7x, ~240 f/B on v5e).
    th only has to keep the double-buffered weight blocks inside VMEM.
    """
    if vmem_cap is None:
        vmem_cap = _device_vmem_bytes()
    usable = int(0.85 * vmem_cap)

    # Hidden tile: double-buffered weight blocks cost 2*((dim,2*th)+(th,dim))*2B
    # = 12*dim*th bytes; keep them under ~45% of usable VMEM. Multiple of 128.
    th = min(_round_up(hidden, 128), 1024)
    while th > 128 and 12 * dim * th > 0.45 * usable:
        th -= 128
    th = max(128, th)

    # M tile: 1024 on 128 MiB chips (v5e/v6e), 512 on 64 MiB (v7x);
    # multiple of 128, clamped to the (padded) problem size and to VMEM.
    tm_target = 1024 if vmem_cap >= 96 * 1024 * 1024 else 512
    tm = min(_round_up(tm_target, 128), _round_up(M, 128))

    def _budget(t):
        weights = 12 * dim * th          # double-buffered wgu + wd (bf16)
        x_blocks = 2 * t * dim * 2       # double-buffered x block (bf16)
        out_block = t * dim * 2          # single-buffered output block (bf16)
        acc = t * dim * 4                # f32 accumulator scratch
        interm = 12 * t * th             # f32 intermediates: gu (t,2th)+act (t,th)
        return weights + x_blocks + out_block + acc + interm

    while tm > 128 and _budget(tm) > usable:
        tm -= 128
    tm = max(128, tm)
    return tm, th, _budget(tm), vmem_cap


def prepare_mlp_params(w_gate, w_up, w_down, *, th):
    """One-time (parameter-load time) weight preparation.

    w_gate, w_up : (hidden, dim)   PyTorch nn.Linear layout (out, in)
    w_down       : (dim, hidden)

    Returns:
      wgu : (dim, 2*hidden_pad)  gate/up fused; tile h occupies columns
            [h*2*th : (h+1)*2*th], first th cols = gate tile, next th = up tile.
      wd_t: (hidden_pad, dim)    down_proj transposed to (in, out).
    Hidden is zero-padded to a multiple of th (padded cols/rows contribute 0).
    """
    hidden, dim = w_gate.shape
    hidden_pad = _round_up(hidden, th)

    wg_t = w_gate.T          # (dim, hidden)
    wu_t = w_up.T            # (dim, hidden)
    wd_t = w_down.T          # (hidden, dim)
    if hidden_pad != hidden:
        pad = hidden_pad - hidden
        wg_t = jnp.pad(wg_t, ((0, 0), (0, pad)))
        wu_t = jnp.pad(wu_t, ((0, 0), (0, pad)))
        wd_t = jnp.pad(wd_t, ((0, pad), (0, 0)))

    n_h = hidden_pad // th
    wgu = jnp.concatenate(
        [wg_t.reshape(dim, n_h, 1, th), wu_t.reshape(dim, n_h, 1, th)], axis=2
    ).reshape(dim, 2 * hidden_pad)
    return wgu, wd_t


def _mlp_kernel(x_ref, wgu_ref, wd_ref, o_ref, acc_ref, *, th):
    # x_ref  : (tm, dim)       bf16
    # wgu_ref: (dim, 2*th)     bf16   [gate tile | up tile]
    # wd_ref : (th, dim)       bf16
    # o_ref  : (tm, dim)       bf16
    # acc_ref: (tm, dim)       f32 accumulator (resident across hidden tiles)
    h = pl.program_id(1)

    @pl.when(h == 0)
    def _():
        acc_ref[...] = jnp.zeros_like(acc_ref)

    x = x_ref[...]
    # Fused gate+up projection: one (tm, dim) x (dim, 2*th) MXU matmul.
    gu = jnp.dot(x, wgu_ref[...], preferred_element_type=jnp.float32)
    gate = gu[:, :th]
    up = gu[:, th:]
    # SiLU(gate) * up in f32 (sigmoid rides the EUP slot; MXU is the binder).
    act = (gate * jax.nn.sigmoid(gate)) * up

    acc_ref[...] += jnp.dot(act.astype(wd_ref.dtype), wd_ref[...],
                            preferred_element_type=jnp.float32)

    @pl.when(h == pl.num_programs(1) - 1)
    def _():
        o_ref[...] = acc_ref[...].astype(o_ref.dtype)


def mlp_forward(x, wgu, wd_t, *, th, tm, vmem_cap=None):
    """x: (batch, seq, dim). wgu/wd_t from prepare_mlp_params (same th)."""
    batch, seq, dim = x.shape
    hidden_pad = wd_t.shape[0]
    assert wgu.shape == (dim, 2 * hidden_pad)
    assert hidden_pad % th == 0
    assert tm % 128 == 0 and th % 128 == 0
    if vmem_cap is None:
        vmem_cap = _device_vmem_bytes()

    M = batch * seq
    M_pad = _round_up(M, tm)

    x2d = x.reshape(M, dim)
    if M_pad != M:
        x2d = jnp.pad(x2d, ((0, M_pad - M), (0, 0)))

    n_m = M_pad // tm
    n_h = hidden_pad // th

    # VMEM need: double-buffered bf16 weight/x blocks, single-buffered out,
    # f32 accumulator, plus the f32 gu/act intermediates the compiler
    # materializes as internal scratch.
    needed = (12 * dim * th
              + 2 * tm * dim * 2
              + tm * dim * 2
              + tm * dim * 4
              + 12 * tm * th)
    vmem_limit = int(min(max(int(needed * 1.3), 32 * 1024 * 1024),
                         int(0.9 * vmem_cap)))

    # Weights are re-read from HBM once per M tile.
    weight_bytes = int((wgu.size + wd_t.size) * wgu.dtype.itemsize)
    act_bytes = int((x2d.size + M_pad * dim) * x.dtype.itemsize)
    cost = pl.CostEstimate(
        flops=6 * M_pad * dim * hidden_pad,
        transcendentals=M_pad * hidden_pad,
        bytes_accessed=n_m * weight_bytes + act_bytes,
    )

    kernel = functools.partial(_mlp_kernel, th=th)

    def _build(single_buffer_out):
        if single_buffer_out:
            # Output block index (i, 0) is constant across h and written once
            # per i at the last h: double-buffering it buys nothing.
            out_spec = pl.BlockSpec((tm, dim), lambda i, h: (i, 0),
                                    pipeline_mode=pl.Buffered(1))
        else:
            out_spec = pl.BlockSpec((tm, dim), lambda i, h: (i, 0))
        return pl.pallas_call(
            kernel,
            out_shape=jax.ShapeDtypeStruct((M_pad, dim), x.dtype),
            grid_spec=pltpu.PrefetchScalarGridSpec(
                num_scalar_prefetch=0,
                grid=(n_m, n_h),
                in_specs=[
                    pl.BlockSpec((tm, dim), lambda i, h: (i, 0)),
                    pl.BlockSpec((dim, 2 * th), lambda i, h: (0, h)),
                    pl.BlockSpec((th, dim), lambda i, h: (h, 0)),
                ],
                out_specs=out_spec,
                scratch_shapes=[pltpu.VMEM((tm, dim), jnp.float32)],
            ),
            compiler_params=pltpu.CompilerParams(
                dimension_semantics=("parallel", "arbitrary"),
                vmem_limit_bytes=vmem_limit,
            ),
            cost_estimate=cost,
        )

    try:
        out2d = _build(single_buffer_out=True)(x2d, wgu, wd_t)
    except Exception:
        # Fallback if pipeline_mode=pl.Buffered(1) is unsupported on this jax.
        out2d = _build(single_buffer_out=False)(x2d, wgu, wd_t)

    return out2d[:M].reshape(batch, seq, dim)


if __name__ == "__main__":
    # Small config consistent with the module: dim=32 -> hidden_dim=256.
    dim = 32
    hidden = _llama_hidden_dim(dim)          # 256
    batch, seq = 2, 8
    dtype = jnp.bfloat16

    key = jax.random.PRNGKey(0)
    kx, kg, ku, kd = jax.random.split(key, 4)

    x = jax.random.normal(kx, (batch, seq, dim), dtype=jnp.float32).astype(dtype)
    # PyTorch nn.Linear weight layout: (out_features, in_features)
    w_gate = (jax.random.normal(kg, (hidden, dim), dtype=jnp.float32) * 0.02).astype(dtype)
    w_up   = (jax.random.normal(ku, (hidden, dim), dtype=jnp.float32) * 0.02).astype(dtype)
    w_down = (jax.random.normal(kd, (dim, hidden), dtype=jnp.float32) * 0.02).astype(dtype)

    # Device-aware tile selection + one-time weight preparation (hoisted out
    # of the forward path).
    tm, th, vmem_needed, vmem_cap = choose_tiles(batch * seq, dim, hidden)
    wgu, wd_t = prepare_mlp_params(w_gate, w_up, w_down, th=th)
    wgu, wd_t = jax.block_until_ready((wgu, wd_t))

    out = mlp_forward(x, wgu, wd_t, th=th, tm=tm, vmem_cap=vmem_cap)
    jax.block_until_ready(out)

    # Pure-JAX reference check (f32).
    xf = x.astype(jnp.float32)
    g = xf @ w_gate.astype(jnp.float32).T
    u = xf @ w_up.astype(jnp.float32).T
    ref = (g * jax.nn.sigmoid(g) * u) @ w_down.astype(jnp.float32).T
    assert jnp.allclose(out.astype(jnp.float32), ref, atol=5e-2, rtol=5e-2)

    print("KERNEL_OK")
</pallas_src>

<mosaic_0001>
module attributes {stable_mosaic.version = 11 : i64} {
  func.func @_mlp_kernel(%arg0: i32, %arg1: i32, %arg2: memref<128x32xbf16, #tpu.memory_space<vmem>>, %arg3: memref<32x512xbf16, #tpu.memory_space<vmem>>, %arg4: memref<256x32xbf16, #tpu.memory_space<vmem>>, %arg5: memref<128x32xbf16, #tpu.memory_space<vmem>>, %arg6: memref<128x32xf32, #tpu.memory_space<vmem>>) attributes {dimension_semantics = [#tpu.dimension_semantics<parallel>, #tpu.dimension_semantics<arbitrary>], iteration_bounds = array<i64: 1, 1>, scalar_prefetch = 0 : i64, scratch_operands = 1 : i64, tpu.core_type = #tpu.core_type<tc>, window_params = [{transform_indices = @transform_0, window_bounds = array<i64: 128, 32>}, {transform_indices = @transform_1, window_bounds = array<i64: 32, 512>}, {transform_indices = @transform_2, window_bounds = array<i64: 256, 32>}, {pipeline_mode = #tpu.pipeline_mode<synchronous>, transform_indices = @transform_3, window_bounds = array<i64: 128, 32>}]} {
    %c0_i32 = arith.constant 0 : i32
    %0 = arith.cmpi eq, %arg1, %c0_i32 : i32
    %1 = arith.extui %0 : i1 to i32
    %c0_i32_0 = arith.constant 0 : i32
    %2 = arith.cmpi ne, %1, %c0_i32_0 : i32
    scf.if %2 {
      %cst_14 = arith.constant 0.000000e+00 : f32
      %24 = vector.broadcast %cst_14 : f32 to vector<128x32xf32>
      %c0_15 = arith.constant 0 : index
      %c0_16 = arith.constant 0 : index
      %25 = vector.load %arg6[%c0_15, %c0_16] : memref<128x32xf32, #tpu.memory_space<vmem>>, vector<128x32xf32>
      tpu.vector_store %arg6[%c0_15, %c0_16], %24 {strides = array<i32>} : memref<128x32xf32, #tpu.memory_space<vmem>>, vector<128x32xf32>,
    } else {
    }
    %c0 = arith.constant 0 : index
    %c0_1 = arith.constant 0 : index
    %3 = vector.load %arg2[%c0, %c0_1] : memref<128x32xbf16, #tpu.memory_space<vmem>>, vector<128x32xbf16>
    %c0_2 = arith.constant 0 : index
    %c0_3 = arith.constant 0 : index
    %4 = vector.load %arg3[%c0_2, %c0_3] : memref<32x512xbf16, #tpu.memory_space<vmem>>, vector<32x512xbf16>
    %cst = arith.constant dense<0.000000e+00> : vector<128x512xf32>
    %5 = tpu.matmul %3, %4, %cst {dimension_numbers = #tpu.dot_dimension_numbers<[1], [0], [0], [1], [0, 0, 1, 1], [], []>} : vector<128x32xbf16>, vector<32x512xbf16>, vector<128x512xf32> -> vector<128x512xf32>
    %6 = vector.extract_strided_slice %5 {offsets = [0, 0], sizes = [128, 256], strides = [1, 1]} : vector<128x512xf32> to vector<128x256xf32>
    %7 = vector.extract_strided_slice %5 {offsets = [0, 256], sizes = [128, 256], strides = [1, 1]} : vector<128x512xf32> to vector<128x256xf32>
    %8 = arith.negf %6 : vector<128x256xf32>
    %9 = math.exp %8 : vector<128x256xf32>
    %cst_4 = arith.constant 1.000000e+00 : f32
    %10 = vector.broadcast %cst_4 : f32 to vector<128x256xf32>
    %11 = arith.addf %10, %9 : vector<128x256xf32>
    %12 = arith.divf %10, %11 : vector<128x256xf32>
    %13 = arith.mulf %6, %12 : vector<128x256xf32>
    %14 = arith.mulf %13, %7 : vector<128x256xf32>
    %c0_5 = arith.constant 0 : index
    %c0_6 = arith.constant 0 : index
    %15 = vector.load %arg6[%c0_5, %c0_6] : memref<128x32xf32, #tpu.memory_space<vmem>>, vector<128x32xf32>
    %16 = arith.truncf %14 : vector<128x256xf32> to vector<128x256xbf16>
    %c0_7 = arith.constant 0 : index
    %c0_8 = arith.constant 0 : index
    %17 = vector.load %arg4[%c0_7, %c0_8] : memref<256x32xbf16, #tpu.memory_space<vmem>>, vector<256x32xbf16>
    %cst_9 = arith.constant dense<0.000000e+00> : vector<128x32xf32>
    %18 = tpu.matmul %16, %17, %cst_9 {dimension_numbers = #tpu.dot_dimension_numbers<[1], [0], [0], [1], [0, 0, 1, 1], [], []>} : vector<128x256xbf16>, vector<256x32xbf16>, vector<128x32xf32> -> vector<128x32xf32>
    %19 = arith.addf %15, %18 : vector<128x32xf32>
    %c0_10 = arith.constant 0 : index
    %c0_11 = arith.constant 0 : index
    %20 = vector.load %arg6[%c0_10, %c0_11] : memref<128x32xf32, #tpu.memory_space<vmem>>, vector<128x32xf32>
    tpu.vector_store %arg6[%c0_10, %c0_11], %19 {strides = array<i32>} : memref<128x32xf32, #tpu.memory_space<vmem>>, vector<128x32xf32>,
    %c0_i32_12 = arith.constant 0 : i32
    %21 = arith.cmpi eq, %arg1, %c0_i32_12 : i32
    %22 = arith.extui %21 : i1 to i32
    %c0_i32_13 = arith.constant 0 : i32
    %23 = arith.cmpi ne, %22, %c0_i32_13 : i32
    scf.if %23 {
      %c0_14 = arith.constant 0 : index
      %c0_15 = arith.constant 0 : index
      %24 = vector.load %arg6[%c0_14, %c0_15] : memref<128x32xf32, #tpu.memory_space<vmem>>, vector<128x32xf32>
      %25 = arith.truncf %24 : vector<128x32xf32> to vector<128x32xbf16>
      %c0_16 = arith.constant 0 : index
      %c0_17 = arith.constant 0 : index
      %26 = vector.load %arg5[%c0_16, %c0_17] : memref<128x32xbf16, #tpu.memory_space<vmem>>, vector<128x32xbf16>
      tpu.vector_store %arg5[%c0_16, %c0_17], %25 {strides = array<i32>} : memref<128x32xbf16, #tpu.memory_space<vmem>>, vector<128x32xbf16>,
    } else {
    }
    return
  }
  func.func @transform_0(%arg0: i32, %arg1: i32) -> (i32, i32) {
    %c0_i32 = arith.constant 0 : i32
    %c0_i32_0 = arith.constant 0 : i32
    return %arg0, %c0_i32 : i32, i32
  }
  func.func @transform_1(%arg0: i32, %arg1: i32) -> (i32, i32) {
    %c0_i32 = arith.constant 0 : i32
    %c0_i32_0 = arith.constant 0 : i32
    return %c0_i32, %arg1 : i32, i32
  }
  func.func @transform_2(%arg0: i32, %arg1: i32) -> (i32, i32) {
    %c0_i32 = arith.constant 0 : i32
    %c0_i32_0 = arith.constant 0 : i32
    return %arg1, %c0_i32 : i32, i32
  }
  func.func @transform_3(%arg0: i32, %arg1: i32) -> (i32, i32) {
    %c0_i32 = arith.constant 0 : i32
    %c0_i32_0 = arith.constant 0 : i32
    return %arg0, %c0_i32 : i32, i32
  }
}

module attributes {stable_mosaic.version = 11 : i64} {
  func.func @_mlp_kernel(%arg0: i32, %arg1: i32, %arg2: memref<128x32xbf16, #tpu.memory_space<vmem>>, %arg3: memref<32x512xbf16, #tpu.memory_space<vmem>>, %arg4: memref<256x32xbf16, #tpu.memory_space<vmem>>, %arg5: memref<128x32xbf16, #tpu.memory_space<vmem>>, %arg6: memref<128x32xf32, #tpu.memory_space<vmem>>) attributes {dimension_semantics = [#tpu.dimension_semantics<parallel>, #tpu.dimension_semantics<arbitrary>], iteration_bounds = array<i64: 1, 1>, scalar_prefetch = 0 : i64, scratch_operands = 1 : i64, tpu.core_type = #tpu.core_type<tc>, window_params = [{transform_indices = @transform_0, window_bounds = array<i64: 128, 32>}, {transform_indices = @transform_1, window_bounds = array<i64: 32, 512>}, {transform_indices = @transform_2, window_bounds = array<i64: 256, 32>}, {transform_indices = @transform_3, window_bounds = array<i64: 128, 32>}]} {
    %c0_i32 = arith.constant 0 : i32
    %0 = arith.cmpi eq, %arg1, %c0_i32 : i32
    %1 = arith.extui %0 : i1 to i32
    %c0_i32_0 = arith.constant 0 : i32
    %2 = arith.cmpi ne, %1, %c0_i32_0 : i32
    scf.if %2 {
      %cst_14 = arith.constant 0.000000e+00 : f32
      %24 = vector.broadcast %cst_14 : f32 to vector<128x32xf32>
      %c0_15 = arith.constant 0 : index
      %c0_16 = arith.constant 0 : index
      %25 = vector.load %arg6[%c0_15, %c0_16] : memref<128x32xf32, #tpu.memory_space<vmem>>, vector<128x32xf32>
      tpu.vector_store %arg6[%c0_15, %c0_16], %24 {strides = array<i32>} : memref<128x32xf32, #tpu.memory_space<vmem>>, vector<128x32xf32>,
    } else {
    }
    %c0 = arith.constant 0 : index
    %c0_1 = arith.constant 0 : index
    %3 = vector.load %arg2[%c0, %c0_1] : memref<128x32xbf16, #tpu.memory_space<vmem>>, vector<128x32xbf16>
    %c0_2 = arith.constant 0 : index
    %c0_3 = arith.constant 0 : index
    %4 = vector.load %arg3[%c0_2, %c0_3] : memref<32x512xbf16, #tpu.memory_space<vmem>>, vector<32x512xbf16>
    %cst = arith.constant dense<0.000000e+00> : vector<128x512xf32>
    %5 = tpu.matmul %3, %4, %cst {dimension_numbers = #tpu.dot_dimension_numbers<[1], [0], [0], [1], [0, 0, 1, 1], [], []>} : vector<128x32xbf16>, vector<32x512xbf16>, vector<128x512xf32> -> vector<128x512xf32>
    %6 = vector.extract_strided_slice %5 {offsets = [0, 0], sizes = [128, 256], strides = [1, 1]} : vector<128x512xf32> to vector<128x256xf32>
    %7 = vector.extract_strided_slice %5 {offsets = [0, 256], sizes = [128, 256], strides = [1, 1]} : vector<128x512xf32> to vector<128x256xf32>
    %8 = arith.negf %6 : vector<128x256xf32>
    %9 = math.exp %8 : vector<128x256xf32>
    %cst_4 = arith.constant 1.000000e+00 : f32
    %10 = vector.broadcast %cst_4 : f32 to vector<128x256xf32>
    %11 = arith.addf %10, %9 : vector<128x256xf32>
    %12 = arith.divf %10, %11 : vector<128x256xf32>
    %13 = arith.mulf %6, %12 : vector<128x256xf32>
    %14 = arith.mulf %13, %7 : vector<128x256xf32>
    %c0_5 = arith.constant 0 : index
    %c0_6 = arith.constant 0 : index
    %15 = vector.load %arg6[%c0_5, %c0_6] : memref<128x32xf32, #tpu.memory_space<vmem>>, vector<128x32xf32>
    %16 = arith.truncf %14 : vector<128x256xf32> to vector<128x256xbf16>
    %c0_7 = arith.constant 0 : index
    %c0_8 = arith.constant 0 : index
    %17 = vector.load %arg4[%c0_7, %c0_8] : memref<256x32xbf16, #tpu.memory_space<vmem>>, vector<256x32xbf16>
    %cst_9 = arith.constant dense<0.000000e+00> : vector<128x32xf32>
    %18 = tpu.matmul %16, %17, %cst_9 {dimension_numbers = #tpu.dot_dimension_numbers<[1], [0], [0], [1], [0, 0, 1, 1], [], []>} : vector<128x256xbf16>, vector<256x32xbf16>, vector<128x32xf32> -> vector<128x32xf32>
    %19 = arith.addf %15, %18 : vector<128x32xf32>
    %c0_10 = arith.constant 0 : index
    %c0_11 = arith.constant 0 : index
    %20 = vector.load %arg6[%c0_10, %c0_11] : memref<128x32xf32, #tpu.memory_space<vmem>>, vector<128x32xf32>
    tpu.vector_store %arg6[%c0_10, %c0_11], %19 {strides = array<i32>} : memref<128x32xf32, #tpu.memory_space<vmem>>, vector<128x32xf32>,
    %c0_i32_12 = arith.constant 0 : i32
    %21 = arith.cmpi eq, %arg1, %c0_i32_12 : i32
    %22 = arith.extui %21 : i1 to i32
    %c0_i32_13 = arith.constant 0 : i32
    %23 = arith.cmpi ne, %22, %c0_i32_13 : i32
    scf.if %23 {
      %c0_14 = arith.constant 0 : index
      %c0_15 = arith.constant 0 : index
      %24 = vector.load %arg6[%c0_14, %c0_15] : memref<128x32xf32, #tpu.memory_space<vmem>>, vector<128x32xf32>
      %25 = arith.truncf %24 : vector<128x32xf32> to vector<128x32xbf16>
      %c0_16 = arith.constant 0 : index
      %c0_17 = arith.constant 0 : index
      %26 = vector.load %arg5[%c0_16, %c0_17] : memref<128x32xbf16, #tpu.memory_space<vmem>>, vector<128x32xbf16>
      tpu.vector_store %arg5[%c0_16, %c0_17], %25 {strides = array<i32>} : memref<128x32xbf16, #tpu.memory_space<vmem>>, vector<128x32xbf16>,
    } else {
    }
    return
  }
  func.func @transform_0(%arg0: i32, %arg1: i32) -> (i32, i32) {
    %c0_i32 = arith.constant 0 : i32
    %c0_i32_0 = arith.constant 0 : i32
    return %arg0, %c0_i32 : i32, i32
  }
  func.func @transform_1(%arg0: i32, %arg1: i32) -> (i32, i32) {
    %c0_i32 = arith.constant 0 : i32
    %c0_i32_0 = arith.constant 0 : i32
    return %c0_i32, %arg1 : i32, i32
  }
  func.func @transform_2(%arg0: i32, %arg1: i32) -> (i32, i32) {
    %c0_i32 = arith.constant 0 : i32
    %c0_i32_0 = arith.constant 0 : i32
    return %arg1, %c0_i32 : i32, i32
  }
  func.func @transform_3(%arg0: i32, %arg1: i32) -> (i32, i32) {
    %c0_i32 = arith.constant 0 : i32
    %c0_i32_0 = arith.constant 0 : i32
    return %arg0, %c0_i32 : i32, i32
  }
}

</mosaic_0001>

<llo_original>
// kernel: tpu_custom_call.1
$region0: #{tpu_custom_call.1}
  #allocation0 [shape = 'u32[]', space=smem, size = 0x4, offset = 0x4, fixed_abs, tag = 'smem constant byte address 0x4 - core index']
  #allocation1 [shape = 'u32[144,128]{1,0:T(1,128)}', space=vmem, size = 0x12000, scoped, tag = 'internal scratch']
  #allocation2 [shape = 'f32[128,32]{1,0:T(8,128)}', space=vmem, size = 0x10000, scoped, tag = 'scratch operand']
  %s0 = inlined_call_operand.vmem [shape: bf16[128,32], index: 0, kind: input, shape index: {}]
  %s1 = inlined_call_operand.vmem [shape: bf16[32,512], index: 1, kind: input, shape index: {}]
  %s2 = inlined_call_operand.vmem [shape: bf16[256,32], index: 2, kind: input, shape index: {}]
  %s3 = inlined_call_operand.vmem [shape: bf16[128,32], index: 3, kind: output, shape index: {}]
  %s4 = sld [smem:[#allocation0]]
  $region30: #{tpu_custom_call.1} parent=0
    _
  %s6 = ssub.s32 1, %s4
  %s7 = scalar_select 0, %s6, %s4
  // Predicated region
  $region2: #{tpu_custom_call.1} parent=0 // pred_check
    _
  $region3: #{tpu_custom_call.1} parent=0 // pred_check_branch
    %9 = sbr.rel (0) target = $region5
  $region4: #{tpu_custom_call.1} parent=0 // pred_region
    _
  $region5: #{tpu_custom_call.1} parent=0 // pred_fallthru
    _
  // Predicated region
  $region6: #{tpu_custom_call.1} parent=0 // pred_check
    _
  $region7: #{tpu_custom_call.1} parent=0 // pred_check_branch
    %11 = sbr.rel (0) target = $region9
  $region8: #{tpu_custom_call.1} parent=0 // pred_region
    _
  $region9: #{tpu_custom_call.1} parent=0 // pred_fallthru
    _
  // Predicated region
  $region10: #{tpu_custom_call.1} parent=0 // pred_check
    _
  $region11: #{tpu_custom_call.1} parent=0 // pred_check_branch
    %13 = sbr.rel (0) target = $region13
  $region12: #{tpu_custom_call.1} parent=0 // pred_region
    _
  $region13: #{tpu_custom_call.1} parent=0 // pred_fallthru
    _
  %p15 = scmp.eq.s32.totalorder 0, 0
  // Predicated region
  $region14: #{tpu_custom_call.1} parent=0 // pred_check
    %p16 = pneg %p15
  $region15: #{tpu_custom_call.1} parent=0 // pred_check_branch
    %18 = sbr.rel (%p16) target = $region17
  $region16: #{tpu_custom_call.1} parent=0 // pred_region
    %vm19 = vcmask 261120
    %20 = vst.msk [vmem:[#allocation2] sm:$0xff] %vm19, 0.0
    %21 = vst.msk [vmem:[#allocation2 + $0x8] sm:$0xff] %vm19, 0.0
    %22 = vst.msk [vmem:[#allocation2 + $0x10] sm:$0xff] %vm19, 0.0
    %23 = vst.msk [vmem:[#allocation2 + $0x18] sm:$0xff] %vm19, 0.0
    %24 = vst.msk [vmem:[#allocation2 + $0x20] sm:$0xff] %vm19, 0.0
    %25 = vst.msk [vmem:[#allocation2 + $0x28] sm:$0xff] %vm19, 0.0
    %26 = vst.msk [vmem:[#allocation2 + $0x30] sm:$0xff] %vm19, 0.0
    %27 = vst.msk [vmem:[#allocation2 + $0x38] sm:$0xff] %vm19, 0.0
    %28 = vst.msk [vmem:[#allocation2 + $0x40] sm:$0xff] %vm19, 0.0
    %29 = vst.msk [vmem:[#allocation2 + $0x48] sm:$0xff] %vm19, 0.0
    %30 = vst.msk [vmem:[#allocation2 + $0x50] sm:$0xff] %vm19, 0.0
    %31 = vst.msk [vmem:[#allocation2 + $0x58] sm:$0xff] %vm19, 0.0
    %32 = vst.msk [vmem:[#allocation2 + $0x60] sm:$0xff] %vm19, 0.0
    %33 = vst.msk [vmem:[#allocation2 + $0x68] sm:$0xff] %vm19, 0.0
    %34 = vst.msk [vmem:[#allocation2 + $0x70] sm:$0xff] %vm19, 0.0
    %35 = vst.msk [vmem:[#allocation2 + $0x78] sm:$0xff] %vm19, 0.0
  $region17: #{tpu_custom_call.1} parent=0 // pred_fallthru
    _
  %v36 = vld [vmem:[%s0] sm:$0xf]
  %v37 = vld [vmem:[%s0 + $0x4] sm:$0xf]
  %v38 = vld [vmem:[%s0 + $0x8] sm:$0xf]
  %v39 = vld [vmem:[%s0 + $0xc] sm:$0xf]
  %v40 = vld [vmem:[%s0 + $0x10] sm:$0xf]
  %v41 = vld [vmem:[%s0 + $0x14] sm:$0xf]
  %v42 = vld [vmem:[%s0 + $0x18] sm:$0xf]
  %v43 = vld [vmem:[%s0 + $0x1c] sm:$0xf]
  %v44 = vld [vmem:[%s0 + $0x20] sm:$0xf]
  %v45 = vld [vmem:[%s0 + $0x24] sm:$0xf]
  %v46 = vld [vmem:[%s0 + $0x28] sm:$0xf]
  %v47 = vld [vmem:[%s0 + $0x2c] sm:$0xf]
  %v48 = vld [vmem:[%s0 + $0x30] sm:$0xf]
  %v49 = vld [vmem:[%s0 + $0x34] sm:$0xf]
  %v50 = vld [vmem:[%s0 + $0x38] sm:$0xf]
  %v51 = vld [vmem:[%s0 + $0x3c] sm:$0xf]
  %v52 = vld [vmem:[%s1] sm:$0xff]
  %v53 = vld [vmem:[%s1 + $0x8] sm:$0xff]
  %v54 = vld [vmem:[%s1 + $0x10] sm:$0xff]
  %v55 = vld [vmem:[%s1 + $0x18] sm:$0xff]
  %v56 = vld [vmem:[%s1 + $0x20] sm:$0xff]
  %v57 = vld [vmem:[%s1 + $0x28] sm:$0xff]
  %v58 = vld [vmem:[%s1 + $0x30] sm:$0xff]
  %v59 = vld [vmem:[%s1 + $0x38] sm:$0xff]
  %v76 = vunpack.c.l.b16 %v36
  %v77 = vunpack.c.l.b16 %v37
  %v78 = vunpack.c.l.b16 %v38
  %v79 = vunpack.c.l.b16 %v39
  %v80 = vunpack.c.l.b16 %v40
  %v81 = vunpack.c.l.b16 %v41
  %v82 = vunpack.c.l.b16 %v42
  %v83 = vunpack.c.l.b16 %v43
  %v84 = vunpack.c.l.b16 %v44
  %v85 = vunpack.c.l.b16 %v45
  %v86 = vunpack.c.l.b16 %v46
  %v87 = vunpack.c.l.b16 %v47
  %v88 = vunpack.c.l.b16 %v48
  %v89 = vunpack.c.l.b16 %v49
  %v90 = vunpack.c.l.b16 %v50
  %v91 = vunpack.c.l.b16 %v51
  %v92 = vpack.c.b16 %v77, %v76
  %v93 = vpack.c.b16 %v79, %v78
  %v94 = vpack.c.b16 %v81, %v80
  %v95 = vpack.c.b16 %v83, %v82
  %v96 = vpack.c.b16 %v85, %v84
  %v97 = vpack.c.b16 %v87, %v86
  %v98 = vpack.c.b16 %v89, %v88
  %v99 = vpack.c.b16 %v91, %v90
  %v108 = vunpack.c.l.b16 %v52
  %v109 = vunpack.c.h.b16 %v52
  %v110 = vunpack.c.l.b16 %v53
  %v111 = vunpack.c.h.b16 %v53
  %v112 = vunpack.c.l.b16 %v54
  %v113 = vunpack.c.h.b16 %v54
  %v114 = vunpack.c.l.b16 %v55
  %v115 = vunpack.c.h.b16 %v55
  %v116 = vunpack.c.l.b16 %v56
  %v117 = vunpack.c.h.b16 %v56
  %v118 = vunpack.c.l.b16 %v57
  %v119 = vunpack.c.h.b16 %v57
  %v120 = vunpack.c.l.b16 %v58
  %v121 = vunpack.c.h.b16 %v58
  %v122 = vunpack.c.l.b16 %v59
  %v123 = vunpack.c.h.b16 %v59
  %v124 = vpack.c.b16 %v112, %v108
  %v125 = vpack.c.b16 %v113, %v109
  %v126 = vpack.c.b16 %v114, %v110
  %v127 = vpack.c.b16 %v115, %v111
  %v128 = vpack.c.b16 %v120, %v116
  %v129 = vpack.c.b16 %v121, %v117
  %v130 = vpack.c.b16 %v122, %v118
  %v131 = vpack.c.b16 %v123, %v119
  %vm140 = vcmask 261120
  %v142 = vsel %vm140, %v92, 0
  %v145 = vsel %vm140, %v93, 0
  %v148 = vsel %vm140, %v94, 0
  %v151 = vsel %vm140, %v95, 0
  %v154 = vsel %vm140, %v96, 0
  %v157 = vsel %vm140, %v97, 0
  %v160 = vsel %vm140, %v98, 0
  %v163 = vsel %vm140, %v99, 0
  %165 = vmatprep.subr.bf16.mxu0 0
  %166 = vmatpush1.bf16.msra.mxu0 0
  %167 = vmatprep.subr.bf16.mxu0 0
  %168 = vmatpush1.bf16.msra.mxu0 0
  %169 = vmatprep.subr.bf16.mxu0 0
  %170 = vmatpush1.bf16.msra.mxu0 0
  %171 = vmatprep.subr.bf16.mxu0 0
  %172 = vmatpush1.bf16.msra.mxu0 0
  %173 = vmatprep.subr.bf16.mxu0 0
  %174 = vmatpush1.bf16.msra.mxu0 0
  %175 = vmatprep.subr.bf16.mxu0 0
  %176 = vmatpush1.bf16.msra.mxu0 0
  %177 = vmatprep.subr.bf16.mxu0 %v129
  %178 = vmatpush1.bf16.msra.mxu0 %v128
  %179 = vmatprep.subr.bf16.mxu0 %v125
  %180 = vmatpush1.bf16.msra.mxu0 %v124
  %181 = vmatprep.subr.bf16.mxu0 0
  %182 = vmatpush2.bf16.msra.mxu0 0
  %183 = vmatprep.subr.bf16.mxu0 0
  %184 = vmatpush2.bf16.msra.mxu0 0
  %185 = vmatprep.subr.bf16.mxu0 0
  %186 = vmatpush2.bf16.msra.mxu0 0
  %187 = vmatprep.subr.bf16.mxu0 0
  %188 = vmatpush2.bf16.msra.mxu0 0
  %189 = vmatprep.subr.bf16.mxu0 0
  %190 = vmatpush2.bf16.msra.mxu0 0
  %191 = vmatprep.subr.bf16.mxu0 0
  %192 = vmatpush2.bf16.msra.mxu0 0
  %193 = vmatprep.subr.bf16.mxu0 0
  %194 = vmatpush2.bf16.msra.mxu0 0
  %195 = vmatprep.subr.bf16.mxu0 0
  %196 = vmatpush2.bf16.msra.mxu0 0
  %197 = vmatprep.mubr.bf16.mxu0 0
  %198 = vmatmul.mubr.bf16.gmra.mxu0 %v142
  %v199 = vpop.f32.mrf.mxu0
  %v200 = vadd.f32 0.0, %v199
  %v201 = vpop.f32.mrf.mxu0
  %v202 = vadd.f32 0.0, %v201
  %v203 = vpop.f32.mrf.mxu0
  %v204 = vadd.f32 0.0, %v203
  %v205 = vpop.f32.mrf.mxu0
  %v206 = vadd.f32 0.0, %v205
  %207 = vmatprep.mubr.bf16.mxu0 0
  %208 = vmatmul.mubr.bf16.gmra.mxu0 %v145
  %v209 = vpop.f32.mrf.mxu0
  %v210 = vadd.f32 0.0, %v209
  %v211 = vpop.f32.mrf.mxu0
  %v212 = vadd.f32 0.0, %v211
  %v213 = vpop.f32.mrf.mxu0
  %v214 = vadd.f32 0.0, %v213
  %v215 = vpop.f32.mrf.mxu0
  %v216 = vadd.f32 0.0, %v215
  %217 = vmatprep.mubr.bf16.mxu0 0
  %218 = vmatmul.mubr.bf16.gmra.mxu0 %v148
  %v219 = vpop.f32.mrf.mxu0
  %v220 = vadd.f32 0.0, %v219
  %v221 = vpop.f32.mrf.mxu0
  %v222 = vadd.f32 0.0, %v221
  %v223 = vpop.f32.mrf.mxu0
  %v224 = vadd.f32 0.0, %v223
  %v225 = vpop.f32.mrf.mxu0
  %v226 = vadd.f32 0.0, %v225
  %227 = vmatprep.mubr.bf16.mxu0 0
  %228 = vmatmul.mubr.bf16.gmra.mxu0 %v151
  %v229 = vpop.f32.mrf.mxu0
  %v230 = vadd.f32 0.0, %v229
  %v231 = vpop.f32.mrf.mxu0
  %v232 = vadd.f32 0.0, %v231
  %v233 = vpop.f32.mrf.mxu0
  %v234 = vadd.f32 0.0, %v233
  %v235 = vpop.f32.mrf.mxu0
  %v236 = vadd.f32 0.0, %v235
  %237 = vmatprep.mubr.bf16.mxu0 0
  %238 = vmatmul.mubr.bf16.gmra.mxu0 %v154
  %v239 = vpop.f32.mrf.mxu0
  %v240 = vadd.f32 0.0, %v239
  %v241 = vpop.f32.mrf.mxu0
  %v242 = vadd.f32 0.0, %v241
  %v243 = vpop.f32.mrf.mxu0
  %v244 = vadd.f32 0.0, %v243
  %v245 = vpop.f32.mrf.mxu0
  %v246 = vadd.f32 0.0, %v245
  %247 = vmatprep.mubr.bf16.mxu0 0
  %248 = vmatmul.mubr.bf16.gmra.mxu0 %v157
  %v249 = vpop.f32.mrf.mxu0
  %v250 = vadd.f32 0.0, %v249
  %v251 = vpop.f32.mrf.mxu0
  %v252 = vadd.f32 0.0, %v251
  %v253 = vpop.f32.mrf.mxu0
  %v254 = vadd.f32 0.0, %v253
  %v255 = vpop.f32.mrf.mxu0
  %v256 = vadd.f32 0.0, %v255
  %257 = vmatprep.mubr.bf16.mxu0 0
  %258 = vmatmul.mubr.bf16.gmra.mxu0 %v160
  %v259 = vpop.f32.mrf.mxu0
  %v260 = vadd.f32 0.0, %v259
  %v261 = vpop.f32.mrf.mxu0
  %v262 = vadd.f32 0.0, %v261
  %v263 = vpop.f32.mrf.mxu0
  %v264 = vadd.f32 0.0, %v263
  %v265 = vpop.f32.mrf.mxu0
  %v266 = vadd.f32 0.0, %v265
  %267 = vmatprep.mubr.bf16.mxu0 0
  %268 = vmatmul.mubr.bf16.gmra.mxu0 %v163
  %v269 = vpop.f32.mrf.mxu0
  %v270 = vadd.f32 0.0, %v269
  %v271 = vpop.f32.mrf.mxu0
  %v272 = vadd.f32 0.0, %v271
  %v273 = vpop.f32.mrf.mxu0
  %v274 = vadd.f32 0.0, %v273
  %v275 = vpop.f32.mrf.mxu0
  %v276 = vadd.f32 0.0, %v275
  %277 = vdwg.mxu0
  %278 = vmatprep.subr.bf16.mxu0 0
  %279 = vmatpush1.bf16.msra.mxu0 0
  %280 = vmatprep.subr.bf16.mxu0 0
  %281 = vmatpush1.bf16.msra.mxu0 0
  %282 = vmatprep.subr.bf16.mxu0 0
  %283 = vmatpush1.bf16.msra.mxu0 0
  %284 = vmatprep.subr.bf16.mxu0 0
  %285 = vmatpush1.bf16.msra.mxu0 0
  %286 = vmatprep.subr.bf16.mxu0 0
  %287 = vmatpush1.bf16.msra.mxu0 0
  %288 = vmatprep.subr.bf16.mxu0 0
  %289 = vmatpush1.bf16.msra.mxu0 0
  %290 = vmatprep.subr.bf16.mxu0 %v131
  %291 = vmatpush1.bf16.msra.mxu0 %v130
  %292 = vmatprep.subr.bf16.mxu0 %v127
  %293 = vmatpush1.bf16.msra.mxu0 %v126
  %294 = vmatprep.subr.bf16.mxu0 0
  %295 = vmatpush2.bf16.msra.mxu0 0
  %296 = vmatprep.subr.bf16.mxu0 0
  %297 = vmatpush2.bf16.msra.mxu0 0
  %298 = vmatprep.subr.bf16.mxu0 0
  %299 = vmatpush2.bf16.msra.mxu0 0
  %300 = vmatprep.subr.bf16.mxu0 0
  %301 = vmatpush2.bf16.msra.mxu0 0
  %302 = vmatprep.subr.bf16.mxu0 0
  %303 = vmatpush2.bf16.msra.mxu0 0
  %304 = vmatprep.subr.bf16.mxu0 0
  %305 = vmatpush2.bf16.msra.mxu0 0
  %306 = vmatprep.subr.bf16.mxu0 0
  %307 = vmatpush2.bf16.msra.mxu0 0
  %308 = vmatprep.subr.bf16.mxu0 0
  %309 = vmatpush2.bf16.msra.mxu0 0
  %310 = vmatprep.mubr.bf16.mxu0 0
  %311 = vmatmul.mubr.bf16.gmra.mxu0 %v142
  %v312 = vpop.f32.mrf.mxu0
  %v313 = vadd.f32 0.0, %v312
  %v314 = vpop.f32.mrf.mxu0
  %v315 = vadd.f32 0.0, %v314
  %v316 = vpop.f32.mrf.mxu0
  %v317 = vadd.f32 0.0, %v316
  %v318 = vpop.f32.mrf.mxu0
  %v319 = vadd.f32 0.0, %v318
  %320 = vmatprep.mubr.bf16.mxu0 0
  %321 = vmatmul.mubr.bf16.gmra.mxu0 %v145
  %v322 = vpop.f32.mrf.mxu0
  %v323 = vadd.f32 0.0, %v322
  %v324 = vpop.f32.mrf.mxu0
  %v325 = vadd.f32 0.0, %v324
  %v326 = vpop.f32.mrf.mxu0
  %v327 = vadd.f32 0.0, %v326
  %v328 = vpop.f32.mrf.mxu0
  %v329 = vadd.f32 0.0, %v328
  %330 = vmatprep.mubr.bf16.mxu0 0
  %331 = vmatmul.mubr.bf16.gmra.mxu0 %v148
  %v332 = vpop.f32.mrf.mxu0
  %v333 = vadd.f32 0.0, %v332
  %v334 = vpop.f32.mrf.mxu0
  %v335 = vadd.f32 0.0, %v334
  %v336 = vpop.f32.mrf.mxu0
  %v337 = vadd.f32 0.0, %v336
  %v338 = vpop.f32.mrf.mxu0
  %v339 = vadd.f32 0.0, %v338
  %340 = vmatprep.mubr.bf16.mxu0 0
  %341 = vmatmul.mubr.bf16.gmra.mxu0 %v151
  %v342 = vpop.f32.mrf.mxu0
  %v343 = vadd.f32 0.0, %v342
  %v344 = vpop.f32.mrf.mxu0
  %v345 = vadd.f32 0.0, %v344
  %v346 = vpop.f32.mrf.mxu0
  %v347 = vadd.f32 0.0, %v346
  %v348 = vpop.f32.mrf.mxu0
  %v349 = vadd.f32 0.0, %v348
  %350 = vmatprep.mubr.bf16.mxu0 0
  %351 = vmatmul.mubr.bf16.gmra.mxu0 %v154
  %v352 = vpop.f32.mrf.mxu0
  %v353 = vadd.f32 0.0, %v352
  %v354 = vpop.f32.mrf.mxu0
  %v355 = vadd.f32 0.0, %v354
  %v356 = vpop.f32.mrf.mxu0
  %v357 = vadd.f32 0.0, %v356
  %v358 = vpop.f32.mrf.mxu0
  %v359 = vadd.f32 0.0, %v358
  %360 = vmatprep.mubr.bf16.mxu0 0
  %361 = vmatmul.mubr.bf16.gmra.mxu0 %v157
  %v362 = vpop.f32.mrf.mxu0
  %v363 = vadd.f32 0.0, %v362
  %v364 = vpop.f32.mrf.mxu0
  %v365 = vadd.f32 0.0, %v364
  %v366 = vpop.f32.mrf.mxu0
  %v367 = vadd.f32 0.0, %v366
  %v368 = vpop.f32.mrf.mxu0
  %v369 = vadd.f32 0.0, %v368
  %370 = vmatprep.mubr.bf16.mxu0 0
  %371 = vmatmul.mubr.bf16.gmra.mxu0 %v160
  %v372 = vpop.f32.mrf.mxu0
  %v373 = vadd.f32 0.0, %v372
  %v374 = vpop.f32.mrf.mxu0
  %v375 = vadd.f32 0.0, %v374
  %v376 = vpop.f32.mrf.mxu0
  %v377 = vadd.f32 0.0, %v376
  %v378 = vpop.f32.mrf.mxu0
  %v379 = vadd.f32 0.0, %v378
  %380 = vmatprep.mubr.bf16.mxu0 0
  %381 = vmatmul.mubr.bf16.gmra.mxu0 %v163
  %v382 = vpop.f32.mrf.mxu0
  %v383 = vadd.f32 0.0, %v382
  %v384 = vpop.f32.mrf.mxu0
  %v385 = vadd.f32 0.0, %v384
  %v386 = vpop.f32.mrf.mxu0
  %v387 = vadd.f32 0.0, %v386
  %v388 = vpop.f32.mrf.mxu0
  %v389 = vadd.f32 0.0, %v388
  %390 = vdwg.mxu0
  %v391 = vxor.u32 %v200, 2147483648
  %v392 = vxor.u32 %v202, 2147483648
  %v393 = vxor.u32 %v204, 2147483648
  %v394 = vxor.u32 %v206, 2147483648
  %v395 = vxor.u32 %v210, 2147483648
  %v396 = vxor.u32 %v212, 2147483648
  %v397 = vxor.u32 %v214, 2147483648
  %v398 = vxor.u32 %v216, 2147483648
  %v399 = vxor.u32 %v220, 2147483648
  %v400 = vxor.u32 %v222, 2147483648
  %v401 = vxor.u32 %v224, 2147483648
  %v402 = vxor.u32 %v226, 2147483648
  %v403 = vxor.u32 %v230, 2147483648
  %v404 = vxor.u32 %v232, 2147483648
  %v405 = vxor.u32 %v234, 2147483648
  %v406 = vxor.u32 %v236, 2147483648
  %v407 = vxor.u32 %v240, 2147483648
  %v408 = vxor.u32 %v242, 2147483648
  %v409 = vxor.u32 %v244, 2147483648
  %v410 = vxor.u32 %v246, 2147483648
  %v411 = vxor.u32 %v250, 2147483648
  %v412 = vxor.u32 %v252, 2147483648
  %v413 = vxor.u32 %v254, 2147483648
  %v414 = vxor.u32 %v256, 2147483648
  %v415 = vxor.u32 %v260, 2147483648
  %v416 = vxor.u32 %v262, 2147483648
  %v417 = vxor.u32 %v264, 2147483648
  %v418 = vxor.u32 %v266, 2147483648
  %v419 = vxor.u32 %v270, 2147483648
  %v420 = vxor.u32 %v272, 2147483648
  %v421 = vxor.u32 %v274, 2147483648
  %v422 = vxor.u32 %v276, 2147483648
  %v423 = vmul.f32 %v391, 1.442695
  %v424 = vpow.pop %v423
  %v425 = vmul.f32 %v392, 1.442695
  %v426 = vpow.pop %v425
  %v427 = vmul.f32 %v393, 1.442695
  %v428 = vpow.pop %v427
  %v429 = vmul.f32 %v394, 1.442695
  %v430 = vpow.pop %v429
  %v431 = vmul.f32 %v395, 1.442695
  %v432 = vpow.pop %v431
  %v433 = vmul.f32 %v396, 1.442695
  %v434 = vpow.pop %v433
  %v435 = vmul.f32 %v397, 1.442695
  %v436 = vpow.pop %v435
  %v437 = vmul.f32 %v398, 1.442695
  %v438 = vpow.pop %v437
  %v439 = vmul.f32 %v399, 1.442695
  %v440 = vpow.pop %v439
  %v441 = vmul.f32 %v400, 1.442695
  %v442 = vpow.pop %v441
  %v443 = vmul.f32 %v401, 1.442695
  %v444 = vpow.pop %v443
  %v445 = vmul.f32 %v402, 1.442695
  %v446 = vpow.pop %v445
  %v447 = vmul.f32 %v403, 1.442695
  %v448 = vpow.pop %v447
  %v449 = vmul.f32 %v404, 1.442695
  %v450 = vpow.pop %v449
  %v451 = vmul.f32 %v405, 1.442695
  %v452 = vpow.pop %v451
  %v453 = vmul.f32 %v406, 1.442695
  %v454 = vpow.pop %v453
  %v455 = vmul.f32 %v407, 1.442695
  %v456 = vpow.pop %v455
  %v457 = vmul.f32 %v408, 1.442695
  %v458 = vpow.pop %v457
  %v459 = vmul.f32 %v409, 1.442695
  %v460 = vpow.pop %v459
  %v461 = vmul.f32 %v410, 1.442695
  %v462 = vpow.pop %v461
  %v463 = vmul.f32 %v411, 1.442695
  %v464 = vpow.pop %v463
  %v465 = vmul.f32 %v412, 1.442695
  %v466 = vpow.pop %v465
  %v467 = vmul.f32 %v413, 1.442695
  %v468 = vpow.pop %v467
  %v469 = vmul.f32 %v414, 1.442695
  %v470 = vpow.pop %v469
  %v471 = vmul.f32 %v415, 1.442695
  %v472 = vpow.pop %v471
  %v473 = vmul.f32 %v416, 1.442695
  %v474 = vpow.pop %v473
  %v475 = vmul.f32 %v417, 1.442695
  %v476 = vpow.pop %v475
  %v477 = vmul.f32 %v418, 1.442695
  %v478 = vpow.pop %v477
  %v479 = vmul.f32 %v419, 1.442695
  %v480 = vpow.pop %v479
  %v481 = vmul.f32 %v420, 1.442695
  %v482 = vpow.pop %v481
  %v483 = vmul.f32 %v421, 1.442695
  %v484 = vpow.pop %v483
  %v485 = vmul.f32 %v422, 1.442695
  %v486 = vpow.pop %v485
  %v487 = vadd.f32 %v424, 1.0
  %v488 = vadd.f32 %v426, 1.0
  %v489 = vadd.f32 %v428, 1.0
  %v490 = vadd.f32 %v430, 1.0
  %v491 = vadd.f32 %v432, 1.0
  %v492 = vadd.f32 %v434, 1.0
  %v493 = vadd.f32 %v436, 1.0
  %v494 = vadd.f32 %v438, 1.0
  %v495 = vadd.f32 %v440, 1.0
  %v496 = vadd.f32 %v442, 1.0
  %v497 = vadd.f32 %v444, 1.0
  %v498 = vadd.f32 %v446, 1.0
  %v499 = vadd.f32 %v448, 1.0
  %v500 = vadd.f32 %v450, 1.0
  %v501 = vadd.f32 %v452, 1.0
  %v502 = vadd.f32 %v454, 1.0
  %v503 = vadd.f32 %v456, 1.0
  %v504 = vadd.f32 %v458, 1.0
  %v505 = vadd.f32 %v460, 1.0
  %v506 = vadd.f32 %v462, 1.0
  %v507 = vadd.f32 %v464, 1.0
  %v508 = vadd.f32 %v466, 1.0
  %v509 = vadd.f32 %v468, 1.0
  %v510 = vadd.f32 %v470, 1.0
  %v511 = vadd.f32 %v472, 1.0
  %v512 = vadd.f32 %v474, 1.0
  %v513 = vadd.f32 %v476, 1.0
  %v514 = vadd.f32 %v478, 1.0
  %v515 = vadd.f32 %v480, 1.0
  %v516 = vadd.f32 %v482, 1.0
  %v517 = vadd.f32 %v484, 1.0
  %v518 = vadd.f32 %v486, 1.0
  %v519 = vrcp.pop %v487
  %v520 = vmul.f32 1.0, %v519
  %v521 = vrcp.pop %v488
  %v522 = vmul.f32 1.0, %v521
  %v523 = vrcp.pop %v489
  %v524 = vmul.f32 1.0, %v523
  %v525 = vrcp.pop %v490
  %v526 = vmul.f32 1.0, %v525
  %v527 = vrcp.pop %v491
  %v528 = vmul.f32 1.0, %v527
  %v529 = vrcp.pop %v492
  %v530 = vmul.f32 1.0, %v529
  %v531 = vrcp.pop %v493
  %v532 = vmul.f32 1.0, %v531
  %v533 = vrcp.pop %v494
  %v534 = vmul.f32 1.0, %v533
  %v535 = vrcp.pop %v495
  %v536 = vmul.f32 1.0, %v535
  %v537 = vrcp.pop %v496
  %v538 = vmul.f32 1.0, %v537
  %v539 = vrcp.pop %v497
  %v540 = vmul.f32 1.0, %v539
  %v541 = vrcp.pop %v498
  %v542 = vmul.f32 1.0, %v541
  %v543 = vrcp.pop %v499
  %v544 = vmul.f32 1.0, %v543
  %v545 = vrcp.pop %v500
  %v546 = vmul.f32 1.0, %v545
  %v547 = vrcp.pop %v501
  %v548 = vmul.f32 1.0, %v547
  %v549 = vrcp.pop %v502
  %v550 = vmul.f32 1.0, %v549
  %v551 = vrcp.pop %v503
  %v552 = vmul.f32 1.0, %v551
  %v553 = vrcp.pop %v504
  %v554 = vmul.f32 1.0, %v553
  %v555 = vrcp.pop %v505
  %v556 = vmul.f32 1.0, %v555
  %v557 = vrcp.pop %v506
  %v558 = vmul.f32 1.0, %v557
  %v559 = vrcp.pop %v507
  %v560 = vmul.f32 1.0, %v559
  %v561 = vrcp.pop %v508
  %v562 = vmul.f32 1.0, %v561
  %v563 = vrcp.pop %v509
  %v564 = vmul.f32 1.0, %v563
  %v565 = vrcp.pop %v510
  %v566 = vmul.f32 1.0, %v565
  %v567 = vrcp.pop %v511
  %v568 = vmul.f32 1.0, %v567
  %v569 = vrcp.pop %v512
  %v570 = vmul.f32 1.0, %v569
  %v571 = vrcp.pop %v513
  %v572 = vmul.f32 1.0, %v571
  %v573 = vrcp.pop %v514
  %v574 = vmul.f32 1.0, %v573
  %v575 = vrcp.pop %v515
  %v576 = vmul.f32 1.0, %v575
  %v577 = vrcp.pop %v516
  %v578 = vmul.f32 1.0, %v577
  %v579 = vrcp.pop %v517
  %v580 = vmul.f32 1.0, %v579
  %v581 = vrcp.pop %v518
  %v582 = vmul.f32 1.0, %v581
  %v583 = vmul.f32 %v200, %v520
  %v584 = vmul.f32 %v202, %v522
  %v585 = vmul.f32 %v204, %v524
  %v586 = vmul.f32 %v206, %v526
  %v587 = vmul.f32 %v210, %v528
  %v588 = vmul.f32 %v212, %v530
  %v589 = vmul.f32 %v214, %v532
  %v590 = vmul.f32 %v216, %v534
  %v591 = vmul.f32 %v220, %v536
  %v592 = vmul.f32 %v222, %v538
  %v593 = vmul.f32 %v224, %v540
  %v594 = vmul.f32 %v226, %v542
  %v595 = vmul.f32 %v230, %v544
  %v596 = vmul.f32 %v232, %v546
  %v597 = vmul.f32 %v234, %v548
  %v598 = vmul.f32 %v236, %v550
  %v599 = vmul.f32 %v240, %v552
  %v600 = vmul.f32 %v242, %v554
  %v601 = vmul.f32 %v244, %v556
  %v602 = vmul.f32 %v246, %v558
  %v603 = vmul.f32 %v250, %v560
  %v604 = vmul.f32 %v252, %v562
  %v605 = vmul.f32 %v254, %v564
  %v606 = vmul.f32 %v256, %v566
  %v607 = vmul.f32 %v260, %v568
  %v608 = vmul.f32 %v262, %v570
  %v609 = vmul.f32 %v264, %v572
  %v610 = vmul.f32 %v266, %v574
  %v611 = vmul.f32 %v270, %v576
  %v612 = vmul.f32 %v272, %v578
  %v613 = vmul.f32 %v274, %v580
  %v614 = vmul.f32 %v276, %v582
  %v615 = vmul.f32 %v583, %v313
  %v616 = vmul.f32 %v584, %v315
  %v617 = vmul.f32 %v585, %v317
  %v618 = vmul.f32 %v586, %v319
  %v619 = vmul.f32 %v587, %v323
  %v620 = vmul.f32 %v588, %v325
  %v621 = vmul.f32 %v589, %v327
  %v622 = vmul.f32 %v590, %v329
  %v623 = vmul.f32 %v591, %v333
  %v624 = vmul.f32 %v592, %v335
  %v625 = vmul.f32 %v593, %v337
  %v626 = vmul.f32 %v594, %v339
  %v627 = vmul.f32 %v595, %v343
  %v628 = vmul.f32 %v596, %v345
  %v629 = vmul.f32 %v597, %v347
  %v630 = vmul.f32 %v598, %v349
  %v631 = vmul.f32 %v599, %v353
  %v632 = vmul.f32 %v600, %v355
  %v633 = vmul.f32 %v601, %v357
  %v634 = vmul.f32 %v602, %v359
  %v635 = vmul.f32 %v603, %v363
  %v636 = vmul.f32 %v604, %v365
  %v637 = vmul.f32 %v605, %v367
  %v638 = vmul.f32 %v606, %v369
  %v639 = vmul.f32 %v607, %v373
  %v640 = vmul.f32 %v608, %v375
  %v641 = vmul.f32 %v609, %v377
  %v642 = vmul.f32 %v610, %v379
  %v643 = vmul.f32 %v611, %v383
  %v644 = vmul.f32 %v612, %v385
  %v645 = vmul.f32 %v613, %v387
  %v646 = vmul.f32 %v614, %v389
  %v647 = vld [vmem:[#allocation2] sm:$0xff]
  %v648 = vld [vmem:[#allocation2 + $0x8] sm:$0xff]
  %v649 = vld [vmem:[#allocation2 + $0x10] sm:$0xff]
  %v650 = vld [vmem:[#allocation2 + $0x18] sm:$0xff]
  %v651 = vld [vmem:[#allocation2 + $0x20] sm:$0xff]
  %v652 = vld [vmem:[#allocation2 + $0x28] sm:$0xff]
  %v653 = vld [vmem:[#allocation2 + $0x30] sm:$0xff]
  %v654 = vld [vmem:[#allocation2 + $0x38] sm:$0xff]
  %v655 = vld [vmem:[#allocation2 + $0x40] sm:$0xff]
  %v656 = vld [vmem:[#allocation2 + $0x48] sm:$0xff]
  %v657 = vld [vmem:[#allocation2 + $0x50] sm:$0xff]
  %v658 = vld [vmem:[#allocation2 + $0x58] sm:$0xff]
  %v659 = vld [vmem:[#allocation2 + $0x60] sm:$0xff]
  %v660 = vld [vmem:[#allocation2 + $0x68] sm:$0xff]
  %v661 = vld [vmem:[#allocation2 + $0x70] sm:$0xff]
  %v662 = vld [vmem:[#allocation2 + $0x78] sm:$0xff]
  %v663 = vpack.c.bf16 %v617, %v615
  %v664 = vpack.c.bf16 %v618, %v616
  %v665 = vpack.c.bf16 %v621, %v619
  %v666 = vpack.c.bf16 %v622, %v620
  %v667 = vpack.c.bf16 %v625, %v623
  %v668 = vpack.c.bf16 %v626, %v624
  %v669 = vpack.c.bf16 %v629, %v627
  %v670 = vpack.c.bf16 %v630, %v628
  %v671 = vpack.c.bf16 %v633, %v631
  %v672 = vpack.c.bf16 %v634, %v632
  %v673 = vpack.c.bf16 %v637, %v635
  %v674 = vpack.c.bf16 %v638, %v636
  %v675 = vpack.c.bf16 %v641, %v639
  %v676 = vpack.c.bf16 %v642, %v640
  %v677 = vpack.c.bf16 %v645, %v643
  %v678 = vpack.c.bf16 %v646, %v644
  %v679 = vld [vmem:[%s2] sm:$0xf]
  %v680 = vld [vmem:[%s2 + $0x4] sm:$0xf]
  %v681 = vld [vmem:[%s2 + $0x8] sm:$0xf]
  %v682 = vld [vmem:[%s2 + $0xc] sm:$0xf]
  %v683 = vld [vmem:[%s2 + $0x10] sm:$0xf]
  %v684 = vld [vmem:[%s2 + $0x14] sm:$0xf]
  %v685 = vld [vmem:[%s2 + $0x18] sm:$0xf]
  %v686 = vld [vmem:[%s2 + $0x1c] sm:$0xf]
  %v687 = vld [vmem:[%s2 + $0x20] sm:$0xf]
  %v688 = vld [vmem:[%s2 + $0x24] sm:$0xf]
  %v689 = vld [vmem:[%s2 + $0x28] sm:$0xf]
  %v690 = vld [vmem:[%s2 + $0x2c] sm:$0xf]
  %v691 = vld [vmem:[%s2 + $0x30] sm:$0xf]
  %v692 = vld [vmem:[%s2 + $0x34] sm:$0xf]
  %v693 = vld [vmem:[%s2 + $0x38] sm:$0xf]
  %v694 = vld [vmem:[%s2 + $0x3c] sm:$0xf]
  %v695 = vld [vmem:[%s2 + $0x40] sm:$0xf]
  %v696 = vld [vmem:[%s2 + $0x44] sm:$0xf]
  %v697 = vld [vmem:[%s2 + $0x48] sm:$0xf]
  %v698 = vld [vmem:[%s2 + $0x4c] sm:$0xf]
  %v699 = vld [vmem:[%s2 + $0x50] sm:$0xf]
  %v700 = vld [vmem:[%s2 + $0x54] sm:$0xf]
  %v701 = vld [vmem:[%s2 + $0x58] sm:$0xf]
  %v702 = vld [vmem:[%s2 + $0x5c] sm:$0xf]
  %v703 = vld [vmem:[%s2 + $0x60] sm:$0xf]
  %v704 = vld [vmem:[%s2 + $0x64] sm:$0xf]
  %v705 = vld [vmem:[%s2 + $0x68] sm:$0xf]
  %v706 = vld [vmem:[%s2 + $0x6c] sm:$0xf]
  %v707 = vld [vmem:[%s2 + $0x70] sm:$0xf]
  %v708 = vld [vmem:[%s2 + $0x74] sm:$0xf]
  %v709 = vld [vmem:[%s2 + $0x78] sm:$0xf]
  %v710 = vld [vmem:[%s2 + $0x7c] sm:$0xf]
  %v743 = vunpack.c.l.b16 %v679
  %v744 = vunpack.c.l.b16 %v680
  %v745 = vunpack.c.l.b16 %v681
  %v746 = vunpack.c.l.b16 %v682
  %v747 = vunpack.c.l.b16 %v683
  %v748 = vunpack.c.l.b16 %v684
  %v749 = vunpack.c.l.b16 %v685
  %v750 = vunpack.c.l.b16 %v686
  %v751 = vunpack.c.l.b16 %v687
  %v752 = vunpack.c.l.b16 %v688
  %v753 = vunpack.c.l.b16 %v689
  %v754 = vunpack.c.l.b16 %v690
  %v755 = vunpack.c.l.b16 %v691
  %v756 = vunpack.c.l.b16 %v692
  %v757 = vunpack.c.l.b16 %v693
  %v758 = vunpack.c.l.b16 %v694
  %v759 = vunpack.c.l.b16 %v695
  %v760 = vunpack.c.l.b16 %v696
  %v761 = vunpack.c.l.b16 %v697
  %v762 = vunpack.c.l.b16 %v698
  %v763 = vunpack.c.l.b16 %v699
  %v764 = vunpack.c.l.b16 %v700
  %v765 = vunpack.c.l.b16 %v701
  %v766 = vunpack.c.l.b16 %v702
  %v767 = vunpack.c.l.b16 %v703
  %v768 = vunpack.c.l.b16 %v704
  %v769 = vunpack.c.l.b16 %v705
  %v770 = vunpack.c.l.b16 %v706
  %v771 = vunpack.c.l.b16 %v707
  %v772 = vunpack.c.l.b16 %v708
  %v773 = vunpack.c.l.b16 %v709
  %v774 = vunpack.c.l.b16 %v710
  %v775 = vpack.c.b16 %v744, %v743
  %v776 = vpack.c.b16 %v746, %v745
  %v777 = vpack.c.b16 %v748, %v747
  %v778 = vpack.c.b16 %v750, %v749
  %v779 = vpack.c.b16 %v752, %v751
  %v780 = vpack.c.b16 %v754, %v753
  %v781 = vpack.c.b16 %v756, %v755
  %v782 = vpack.c.b16 %v758, %v757
  %v783 = vpack.c.b16 %v760, %v759
  %v784 = vpack.c.b16 %v762, %v761
  %v785 = vpack.c.b16 %v764, %v763
  %v786 = vpack.c.b16 %v766, %v765
  %v787 = vpack.c.b16 %v768, %v767
  %v788 = vpack.c.b16 %v770, %v769
  %v789 = vpack.c.b16 %v772, %v771
  %v790 = vpack.c.b16 %v774, %v773
  %807 = vmatprep.subr.bf16.mxu0 0
  %808 = vmatpush1.bf16.msra.mxu0 %v782
  %809 = vmatprep.subr.bf16.mxu0 0
  %810 = vmatpush1.bf16.msra.mxu0 %v781
  %811 = vmatprep.subr.bf16.mxu0 0
  %812 = vmatpush1.bf16.msra.mxu0 %v780
  %813 = vmatprep.subr.bf16.mxu0 0
  %814 = vmatpush1.bf16.msra.mxu0 %v779
  %815 = vmatprep.subr.bf16.mxu0 0
  %816 = vmatpush1.bf16.msra.mxu0 %v778
  %817 = vmatprep.subr.bf16.mxu0 0
  %818 = vmatpush1.bf16.msra.mxu0 %v777
  %819 = vmatprep.subr.bf16.mxu0 0
  %820 = vmatpush1.bf16.msra.mxu0 %v776
  %821 = vmatprep.subr.bf16.mxu0 0
  %822 = vmatpush1.bf16.msra.mxu0 %v775
  %823 = vmatprep.subr.bf16.mxu0 0
  %824 = vmatpush2.bf16.msra.mxu0 %v790
  %825 = vmatprep.subr.bf16.mxu0 0
  %826 = vmatpush2.bf16.msra.mxu0 %v789
  %827 = vmatprep.subr.bf16.mxu0 0
  %828 = vmatpush2.bf16.msra.mxu0 %v788
  %829 = vmatprep.subr.bf16.mxu0 0
  %830 = vmatpush2.bf16.msra.mxu0 %v787
  %831 = vmatprep.subr.bf16.mxu0 0
  %832 = vmatpush2.bf16.msra.mxu0 %v786
  %833 = vmatprep.subr.bf16.mxu0 0
  %834 = vmatpush2.bf16.msra.mxu0 %v785
  %835 = vmatprep.subr.bf16.mxu0 0
  %836 = vmatpush2.bf16.msra.mxu0 %v784
  %837 = vmatprep.subr.bf16.mxu0 0
  %838 = vmatpush2.bf16.msra.mxu0 %v783
  %839 = vmatprep.mubr.bf16.mxu0 %v664
  %840 = vmatmul.mubr.bf16.gmra.mxu0 %v663
  %v841 = vpop.f32.mrf.mxu0
  %v842 = vadd.f32 0.0, %v841
  %v843 = vpop.f32.mrf.mxu0
  %v844 = vpop.f32.mrf.mxu0
  %v845 = vadd.f32 0.0, %v844
  %v846 = vpop.f32.mrf.mxu0
  %847 = vmatprep.mubr.bf16.mxu0 %v666
  %848 = vmatmul.mubr.bf16.gmra.mxu0 %v665
  %v849 = vpop.f32.mrf.mxu0
  %v850 = vadd.f32 0.0, %v849
  %v851 = vpop.f32.mrf.mxu0
  %v852 = vpop.f32.mrf.mxu0
  %v853 = vadd.f32 0.0, %v852
  %v854 = vpop.f32.mrf.mxu0
  %855 = vmatprep.mubr.bf16.mxu0 %v668
  %856 = vmatmul.mubr.bf16.gmra.mxu0 %v667
  %v857 = vpop.f32.mrf.mxu0
  %v858 = vadd.f32 0.0, %v857
  %v859 = vpop.f32.mrf.mxu0
  %v860 = vpop.f32.mrf.mxu0
  %v861 = vadd.f32 0.0, %v860
  %v862 = vpop.f32.mrf.mxu0
  %863 = vmatprep.mubr.bf16.mxu0 %v670
  %864 = vmatmul.mubr.bf16.gmra.mxu0 %v669
  %v865 = vpop.f32.mrf.mxu0
  %v866 = vadd.f32 0.0, %v865
  %v867 = vpop.f32.mrf.mxu0
  %v868 = vpop.f32.mrf.mxu0
  %v869 = vadd.f32 0.0, %v868
  %v870 = vpop.f32.mrf.mxu0
  %871 = vmatprep.mubr.bf16.mxu0 %v672
  %872 = vmatmul.mubr.bf16.gmra.mxu0 %v671
  %v873 = vpop.f32.mrf.mxu0
  %v874 = vadd.f32 0.0, %v873
  %v875 = vpop.f32.mrf.mxu0
  %v876 = vpop.f32.mrf.mxu0
  %v877 = vadd.f32 0.0, %v876
  %v878 = vpop.f32.mrf.mxu0
  %879 = vmatprep.mubr.bf16.mxu0 %v674
  %880 = vmatmul.mubr.bf16.gmra.mxu0 %v673
  %v881 = vpop.f32.mrf.mxu0
  %v882 = vadd.f32 0.0, %v881
  %v883 = vpop.f32.mrf.mxu0
  %v884 = vpop.f32.mrf.mxu0
  %v885 = vadd.f32 0.0, %v884
  %v886 = vpop.f32.mrf.mxu0
  %887 = vmatprep.mubr.bf16.mxu0 %v676
  %888 = vmatmul.mubr.bf16.gmra.mxu0 %v675
  %v889 = vpop.f32.mrf.mxu0
  %v890 = vadd.f32 0.0, %v889
  %v891 = vpop.f32.mrf.mxu0
  %v892 = vpop.f32.mrf.mxu0
  %v893 = vadd.f32 0.0, %v892
  %v894 = vpop.f32.mrf.mxu0
  %895 = vmatprep.mubr.bf16.mxu0 %v678
  %896 = vmatmul.mubr.bf16.gmra.mxu0 %v677
  %v897 = vpop.f32.mrf.mxu0
  %v898 = vadd.f32 0.0, %v897
  %v899 = vpop.f32.mrf.mxu0
  %v900 = vpop.f32.mrf.mxu0
  %v901 = vadd.f32 0.0, %v900
  %v902 = vpop.f32.mrf.mxu0
  %903 = vdwg.mxu0
  %v904 = vadd.f32 %v647, %v842
  %v905 = vadd.f32 %v648, %v845
  %v906 = vadd.f32 %v649, %v850
  %v907 = vadd.f32 %v650, %v853
  %v908 = vadd.f32 %v651, %v858
  %v909 = vadd.f32 %v652, %v861
  %v910 = vadd.f32 %v653, %v866
  %v911 = vadd.f32 %v654, %v869
  %v912 = vadd.f32 %v655, %v874
  %v913 = vadd.f32 %v656, %v877
  %v914 = vadd.f32 %v657, %v882
  %v915 = vadd.f32 %v658, %v885
  %v916 = vadd.f32 %v659, %v890
  %v917 = vadd.f32 %v660, %v893
  %v918 = vadd.f32 %v661, %v898
  %v919 = vadd.f32 %v662, %v901
  %920 = vst.msk [vmem:[#allocation2] sm:$0xff] %vm140, %v904
  %921 = vst.msk [vmem:[#allocation2 + $0x8] sm:$0xff] %vm140, %v905
  %922 = vst.msk [vmem:[#allocation2 + $0x10] sm:$0xff] %vm140, %v906
  %923 = vst.msk [vmem:[#allocation2 + $0x18] sm:$0xff] %vm140, %v907
  %924 = vst.msk [vmem:[#allocation2 + $0x20] sm:$0xff] %vm140, %v908
  %925 = vst.msk [vmem:[#allocation2 + $0x28] sm:$0xff] %vm140, %v909
  %926 = vst.msk [vmem:[#allocation2 + $0x30] sm:$0xff] %vm140, %v910
  %927 = vst.msk [vmem:[#allocation2 + $0x38] sm:$0xff] %vm140, %v911
  %928 = vst.msk [vmem:[#allocation2 + $0x40] sm:$0xff] %vm140, %v912
  %929 = vst.msk [vmem:[#allocation2 + $0x48] sm:$0xff] %vm140, %v913
  %930 = vst.msk [vmem:[#allocation2 + $0x50] sm:$0xff] %vm140, %v914
  %931 = vst.msk [vmem:[#allocation2 + $0x58] sm:$0xff] %vm140, %v915
  %932 = vst.msk [vmem:[#allocation2 + $0x60] sm:$0xff] %vm140, %v916
  %933 = vst.msk [vmem:[#allocation2 + $0x68] sm:$0xff] %vm140, %v917
  %934 = vst.msk [vmem:[#allocation2 + $0x70] sm:$0xff] %vm140, %v918
  %935 = vst.msk [vmem:[#allocation2 + $0x78] sm:$0xff] %vm140, %v919
  // Predicated region
  $region18: #{tpu_custom_call.1} parent=0 // pred_check
    %p936 = pneg %p15
  $region19: #{tpu_custom_call.1} parent=0 // pred_check_branch
    %938 = sbr.rel (%p936) target = $region21
  $region20: #{tpu_custom_call.1} parent=0 // pred_region
    %v939 = vld [vmem:[#allocation2] sm:$0xff]
    %v940 = vld [vmem:[#allocation2 + $0x8] sm:$0xff]
    %v941 = vld [vmem:[#allocation2 + $0x10] sm:$0xff]
    %v942 = vld [vmem:[#allocation2 + $0x18] sm:$0xff]
    %v943 = vld [vmem:[#allocation2 + $0x20] sm:$0xff]
    %v944 = vld [vmem:[#allocation2 + $0x28] sm:$0xff]
    %v945 = vld [vmem:[#allocation2 + $0x30] sm:$0xff]
    %v946 = vld [vmem:[#allocation2 + $0x38] sm:$0xff]
    %v947 = vld [vmem:[#allocation2 + $0x40] sm:$0xff]
    %v948 = vld [vmem:[#allocation2 + $0x48] sm:$0xff]
    %v949 = vld [vmem:[#allocation2 + $0x50] sm:$0xff]
    %v950 = vld [vmem:[#allocation2 + $0x58] sm:$0xff]
    %v951 = vld [vmem:[#allocation2 + $0x60] sm:$0xff]
    %v952 = vld [vmem:[#allocation2 + $0x68] sm:$0xff]
    %v953 = vld [vmem:[#allocation2 + $0x70] sm:$0xff]
    %v954 = vld [vmem:[#allocation2 + $0x78] sm:$0xff]
    %v955 = vpack.c.bf16 %v940, %v939
    %v956 = vpack.c.bf16 %v942, %v941
    %v957 = vpack.c.bf16 %v944, %v943
    %v958 = vpack.c.bf16 %v946, %v945
    %v959 = vpack.c.bf16 %v948, %v947
    %v960 = vpack.c.bf16 %v950, %v949
    %v961 = vpack.c.bf16 %v952, %v951
    %v962 = vpack.c.bf16 %v954, %v953
    %v971 = vunpack.c.l.b16 %v955
    %v972 = vunpack.c.h.b16 %v955
    %v973 = vunpack.c.l.b16 %v956
    %v974 = vunpack.c.h.b16 %v956
    %v975 = vunpack.c.l.b16 %v957
    %v976 = vunpack.c.h.b16 %v957
    %v977 = vunpack.c.l.b16 %v958
    %v978 = vunpack.c.h.b16 %v958
    %v979 = vunpack.c.l.b16 %v959
    %v980 = vunpack.c.h.b16 %v959
    %v981 = vunpack.c.l.b16 %v960
    %v982 = vunpack.c.h.b16 %v960
    %v983 = vunpack.c.l.b16 %v961
    %v984 = vunpack.c.h.b16 %v961
    %v985 = vunpack.c.l.b16 %v962
    %v986 = vunpack.c.h.b16 %v962
    %v987 = vpack.c.b16 %v971, %v971
    %v988 = vpack.c.b16 %v972, %v972
    %v989 = vpack.c.b16 %v973, %v973
    %v990 = vpack.c.b16 %v974, %v974
    %v991 = vpack.c.b16 %v975, %v975
    %v992 = vpack.c.b16 %v976, %v976
    %v993 = vpack.c.b16 %v977, %v977
    %v994 = vpack.c.b16 %v978, %v978
    %v995 = vpack.c.b16 %v979, %v979
    %v996 = vpack.c.b16 %v980, %v980
    %v997 = vpack.c.b16 %v981, %v981
    %v998 = vpack.c.b16 %v982, %v982
    %v999 = vpack.c.b16 %v983, %v983
    %v1000 = vpack.c.b16 %v984, %v984
    %v1001 = vpack.c.b16 %v985, %v985
    %v1002 = vpack.c.b16 %v986, %v986
    %vm1019 = vcmask 257024
    %1020 = vst.msk [vmem:[%s3] sm:$0xf] %vm1019, %v987
    %1021 = vst.msk [vmem:[%s3 + $0x4] sm:$0xf] %vm1019, %v988
    %1022 = vst.msk [vmem:[%s3 + $0x8] sm:$0xf] %vm1019, %v989
    %1023 = vst.msk [vmem:[%s3 + $0xc] sm:$0xf] %vm1019, %v990
    %1024 = vst.msk [vmem:[%s3 + $0x10] sm:$0xf] %vm1019, %v991
    %1025 = vst.msk [vmem:[%s3 + $0x14] sm:$0xf] %vm1019, %v992
    %1026 = vst.msk [vmem:[%s3 + $0x18] sm:$0xf] %vm1019, %v993
    %1027 = vst.msk [vmem:[%s3 + $0x1c] sm:$0xf] %vm1019, %v994
    %1028 = vst.msk [vmem:[%s3 + $0x20] sm:$0xf] %vm1019, %v995
    %1029 = vst.msk [vmem:[%s3 + $0x24] sm:$0xf] %vm1019, %v996
    %1030 = vst.msk [vmem:[%s3 + $0x28] sm:$0xf] %vm1019, %v997
    %1031 = vst.msk [vmem:[%s3 + $0x2c] sm:$0xf] %vm1019, %v998
    %1032 = vst.msk [vmem:[%s3 + $0x30] sm:$0xf] %vm1019, %v999
    %1033 = vst.msk [vmem:[%s3 + $0x34] sm:$0xf] %vm1019, %v1000
    %1034 = vst.msk [vmem:[%s3 + $0x38] sm:$0xf] %vm1019, %v1001
    %1035 = vst.msk [vmem:[%s3 + $0x3c] sm:$0xf] %vm1019, %v1002
  $region21: #{tpu_custom_call.1} parent=0 // pred_fallthru
    _
  // Predicated region
  $region22: #{tpu_custom_call.1} parent=0 // pred_check
    _
  $region23: #{tpu_custom_call.1} parent=0 // pred_check_branch
    %1037 = sbr.rel (0) target = $region25
  $region24: #{tpu_custom_call.1} parent=0 // pred_region
    _
  $region25: #{tpu_custom_call.1} parent=0 // pred_fallthru
    _
  // Predicated region
  $region26: #{tpu_custom_call.1} parent=0 // pred_check
    _
  $region27: #{tpu_custom_call.1} parent=0 // pred_check_branch
    %1039 = sbr.rel (0) target = $region29
  $region28: #{tpu_custom_call.1} parent=0 // pred_region
    _
  $region29: #{tpu_custom_call.1} parent=0 // pred_fallthru
    _

// kernel: tpu_custom_call.1
$region0: #{tpu_custom_call.1}
  #allocation0 [shape = 'u32[]', space=smem, size = 0x4, offset = 0x4, fixed_abs, tag = 'smem constant byte address 0x4 - core index']
  #allocation1 [shape = 'u32[144,128]{1,0:T(1,128)}', space=vmem, size = 0x12000, scoped, tag = 'internal scratch']
  #allocation2 [shape = 'f32[128,32]{1,0:T(8,128)}', space=vmem, size = 0x10000, scoped, tag = 'scratch operand']
  %s0 = inlined_call_operand.vmem [shape: bf16[128,32], index: 0, kind: input, shape index: {}]
  %s1 = inlined_call_operand.vmem [shape: bf16[32,512], index: 1, kind: input, shape index: {}]
  %s2 = inlined_call_operand.vmem [shape: bf16[256,32], index: 2, kind: input, shape index: {}]
  %s3 = inlined_call_operand.vmem [shape: bf16[128,32], index: 3, kind: output, shape index: {}]
  %s4 = sld [smem:[#allocation0]]
  $region30: #{tpu_custom_call.1} parent=0
    _
  %s6 = ssub.s32 1, %s4
  %s7 = scalar_select 0, %s6, %s4
  // Predicated region
  $region2: #{tpu_custom_call.1} parent=0 // pred_check
    _
  $region3: #{tpu_custom_call.1} parent=0 // pred_check_branch
    %9 = sbr.rel (0) target = $region5
  $region4: #{tpu_custom_call.1} parent=0 // pred_region
    _
  $region5: #{tpu_custom_call.1} parent=0 // pred_fallthru
    _
  // Predicated region
  $region6: #{tpu_custom_call.1} parent=0 // pred_check
    _
  $region7: #{tpu_custom_call.1} parent=0 // pred_check_branch
    %11 = sbr.rel (0) target = $region9
  $region8: #{tpu_custom_call.1} parent=0 // pred_region
    _
  $region9: #{tpu_custom_call.1} parent=0 // pred_fallthru
    _
  // Predicated region
  $region10: #{tpu_custom_call.1} parent=0 // pred_check
    _
  $region11: #{tpu_custom_call.1} parent=0 // pred_check_branch
    %13 = sbr.rel (0) target = $region13
  $region12: #{tpu_custom_call.1} parent=0 // pred_region
    _
  $region13: #{tpu_custom_call.1} parent=0 // pred_fallthru
    _
  %p15 = scmp.eq.s32.totalorder 0, 0
  // Predicated region
  $region14: #{tpu_custom_call.1} parent=0 // pred_check
    %p16 = pneg %p15
  $region15: #{tpu_custom_call.1} parent=0 // pred_check_branch
    %18 = sbr.rel (%p16) target = $region17
  $region16: #{tpu_custom_call.1} parent=0 // pred_region
    %vm19 = vcmask 261120
    %20 = vst.msk [vmem:[#allocation2] sm:$0xff] %vm19, 0.0
    %21 = vst.msk [vmem:[#allocation2 + $0x8] sm:$0xff] %vm19, 0.0
    %22 = vst.msk [vmem:[#allocation2 + $0x10] sm:$0xff] %vm19, 0.0
    %23 = vst.msk [vmem:[#allocation2 + $0x18] sm:$0xff] %vm19, 0.0
    %24 = vst.msk [vmem:[#allocation2 + $0x20] sm:$0xff] %vm19, 0.0
    %25 = vst.msk [vmem:[#allocation2 + $0x28] sm:$0xff] %vm19, 0.0
    %26 = vst.msk [vmem:[#allocation2 + $0x30] sm:$0xff] %vm19, 0.0
    %27 = vst.msk [vmem:[#allocation2 + $0x38] sm:$0xff] %vm19, 0.0
    %28 = vst.msk [vmem:[#allocation2 + $0x40] sm:$0xff] %vm19, 0.0
    %29 = vst.msk [vmem:[#allocation2 + $0x48] sm:$0xff] %vm19, 0.0
    %30 = vst.msk [vmem:[#allocation2 + $0x50] sm:$0xff] %vm19, 0.0
    %31 = vst.msk [vmem:[#allocation2 + $0x58] sm:$0xff] %vm19, 0.0
    %32 = vst.msk [vmem:[#allocation2 + $0x60] sm:$0xff] %vm19, 0.0
    %33 = vst.msk [vmem:[#allocation2 + $0x68] sm:$0xff] %vm19, 0.0
    %34 = vst.msk [vmem:[#allocation2 + $0x70] sm:$0xff] %vm19, 0.0
    %35 = vst.msk [vmem:[#allocation2 + $0x78] sm:$0xff] %vm19, 0.0
  $region17: #{tpu_custom_call.1} parent=0 // pred_fallthru
    _
  %v36 = vld [vmem:[%s0] sm:$0xf]
  %v37 = vld [vmem:[%s0 + $0x4] sm:$0xf]
  %v38 = vld [vmem:[%s0 + $0x8] sm:$0xf]
  %v39 = vld [vmem:[%s0 + $0xc] sm:$0xf]
  %v40 = vld [vmem:[%s0 + $0x10] sm:$0xf]
  %v41 = vld [vmem:[%s0 + $0x14] sm:$0xf]
  %v42 = vld [vmem:[%s0 + $0x18] sm:$0xf]
  %v43 = vld [vmem:[%s0 + $0x1c] sm:$0xf]
  %v44 = vld [vmem:[%s0 + $0x20] sm:$0xf]
  %v45 = vld [vmem:[%s0 + $0x24] sm:$0xf]
  %v46 = vld [vmem:[%s0 + $0x28] sm:$0xf]
  %v47 = vld [vmem:[%s0 + $0x2c] sm:$0xf]
  %v48 = vld [vmem:[%s0 + $0x30] sm:$0xf]
  %v49 = vld [vmem:[%s0 + $0x34] sm:$0xf]
  %v50 = vld [vmem:[%s0 + $0x38] sm:$0xf]
  %v51 = vld [vmem:[%s0 + $0x3c] sm:$0xf]
  %v52 = vld [vmem:[%s1] sm:$0xff]
  %v53 = vld [vmem:[%s1 + $0x8] sm:$0xff]
  %v54 = vld [vmem:[%s1 + $0x10] sm:$0xff]
  %v55 = vld [vmem:[%s1 + $0x18] sm:$0xff]
  %v56 = vld [vmem:[%s1 + $0x20] sm:$0xff]
  %v57 = vld [vmem:[%s1 + $0x28] sm:$0xff]
  %v58 = vld [vmem:[%s1 + $0x30] sm:$0xff]
  %v59 = vld [vmem:[%s1 + $0x38] sm:$0xff]
  %v76 = vunpack.c.l.b16 %v36
  %v77 = vunpack.c.l.b16 %v37
  %v78 = vunpack.c.l.b16 %v38
  %v79 = vunpack.c.l.b16 %v39
  %v80 = vunpack.c.l.b16 %v40
  %v81 = vunpack.c.l.b16 %v41
  %v82 = vunpack.c.l.b16 %v42
  %v83 = vunpack.c.l.b16 %v43
  %v84 = vunpack.c.l.b16 %v44
  %v85 = vunpack.c.l.b16 %v45
  %v86 = vunpack.c.l.b16 %v46
  %v87 = vunpack.c.l.b16 %v47
  %v88 = vunpack.c.l.b16 %v48
  %v89 = vunpack.c.l.b16 %v49
  %v90 = vunpack.c.l.b16 %v50
  %v91 = vunpack.c.l.b16 %v51
  %v92 = vpack.c.b16 %v77, %v76
  %v93 = vpack.c.b16 %v79, %v78
  %v94 = vpack.c.b16 %v81, %v80
  %v95 = vpack.c.b16 %v83, %v82
  %v96 = vpack.c.b16 %v85, %v84
  %v97 = vpack.c.b16 %v87, %v86
  %v98 = vpack.c.b16 %v89, %v88
  %v99 = vpack.c.b16 %v91, %v90
  %v108 = vunpack.c.l.b16 %v52
  %v109 = vunpack.c.h.b16 %v52
  %v110 = vunpack.c.l.b16 %v53
  %v111 = vunpack.c.h.b16 %v53
  %v112 = vunpack.c.l.b16 %v54
  %v113 = vunpack.c.h.b16 %v54
  %v114 = vunpack.c.l.b16 %v55
  %v115 = vunpack.c.h.b16 %v55
  %v116 = vunpack.c.l.b16 %v56
  %v117 = vunpack.c.h.b16 %v56
  %v118 = vunpack.c.l.b16 %v57
  %v119 = vunpack.c.h.b16 %v57
  %v120 = vunpack.c.l.b16 %v58
  %v121 = vunpack.c.h.b16 %v58
  %v122 = vunpack.c.l.b16 %v59
  %v123 = vunpack.c.h.b16 %v59
  %v124 = vpack.c.b16 %v112, %v108
  %v125 = vpack.c.b16 %v113, %v109
  %v126 = vpack.c.b16 %v114, %v110
  %v127 = vpack.c.b16 %v115, %v111
  %v128 = vpack.c.b16 %v120, %v116
  %v129 = vpack.c.b16 %v121, %v117
  %v130 = vpack.c.b16 %v122, %v118
  %v131 = vpack.c.b16 %v123, %v119
  %vm140 = vcmask 261120
  %v142 = vsel %vm140, %v92, 0
  %v145 = vsel %vm140, %v93, 0
  %v148 = vsel %vm140, %v94, 0
  %v151 = vsel %vm140, %v95, 0
  %v154 = vsel %vm140, %v96, 0
  %v157 = vsel %vm140, %v97, 0
  %v160 = vsel %vm140, %v98, 0
  %v163 = vsel %vm140, %v99, 0
  %165 = vmatprep.subr.bf16.mxu0 0
  %166 = vmatpush1.bf16.msra.mxu0 0
  %167 = vmatprep.subr.bf16.mxu0 0
  %168 = vmatpush1.bf16.msra.mxu0 0
  %169 = vmatprep.subr.bf16.mxu0 0
  %170 = vmatpush1.bf16.msra.mxu0 0
  %171 = vmatprep.subr.bf16.mxu0 0
  %172 = vmatpush1.bf16.msra.mxu0 0
  %173 = vmatprep.subr.bf16.mxu0 0
  %174 = vmatpush1.bf16.msra.mxu0 0
  %175 = vmatprep.subr.bf16.mxu0 0
  %176 = vmatpush1.bf16.msra.mxu0 0
  %177 = vmatprep.subr.bf16.mxu0 %v129
  %178 = vmatpush1.bf16.msra.mxu0 %v128
  %179 = vmatprep.subr.bf16.mxu0 %v125
  %180 = vmatpush1.bf16.msra.mxu0 %v124
  %181 = vmatprep.subr.bf16.mxu0 0
  %182 = vmatpush2.bf16.msra.mxu0 0
  %183 = vmatprep.subr.bf16.mxu0 0
  %184 = vmatpush2.bf16.msra.mxu0 0
  %185 = vmatprep.subr.bf16.mxu0 0
  %186 = vmatpush2.bf16.msra.mxu0 0
  %187 = vmatprep.subr.bf16.mxu0 0
  %188 = vmatpush2.bf16.msra.mxu0 0
  %189 = vmatprep.subr.bf16.mxu0 0
  %190 = vmatpush2.bf16.msra.mxu0 0
  %191 = vmatprep.subr.bf16.mxu0 0
  %192 = vmatpush2.bf16.msra.mxu0 0
  %193 = vmatprep.subr.bf16.mxu0 0
  %194 = vmatpush2.bf16.msra.mxu0 0
  %195 = vmatprep.subr.bf16.mxu0 0
  %196 = vmatpush2.bf16.msra.mxu0 0
  %197 = vmatprep.mubr.bf16.mxu0 0
  %198 = vmatmul.mubr.bf16.gmra.mxu0 %v142
  %v199 = vpop.f32.mrf.mxu0
  %v200 = vadd.f32 0.0, %v199
  %v201 = vpop.f32.mrf.mxu0
  %v202 = vadd.f32 0.0, %v201
  %v203 = vpop.f32.mrf.mxu0
  %v204 = vadd.f32 0.0, %v203
  %v205 = vpop.f32.mrf.mxu0
  %v206 = vadd.f32 0.0, %v205
  %207 = vmatprep.mubr.bf16.mxu0 0
  %208 = vmatmul.mubr.bf16.gmra.mxu0 %v145
  %v209 = vpop.f32.mrf.mxu0
  %v210 = vadd.f32 0.0, %v209
  %v211 = vpop.f32.mrf.mxu0
  %v212 = vadd.f32 0.0, %v211
  %v213 = vpop.f32.mrf.mxu0
  %v214 = vadd.f32 0.0, %v213
  %v215 = vpop.f32.mrf.mxu0
  %v216 = vadd.f32 0.0, %v215
  %217 = vmatprep.mubr.bf16.mxu0 0
  %218 = vmatmul.mubr.bf16.gmra.mxu0 %v148
  %v219 = vpop.f32.mrf.mxu0
  %v220 = vadd.f32 0.0, %v219
  %v221 = vpop.f32.mrf.mxu0
  %v222 = vadd.f32 0.0, %v221
  %v223 = vpop.f32.mrf.mxu0
  %v224 = vadd.f32 0.0, %v223
  %v225 = vpop.f32.mrf.mxu0
  %v226 = vadd.f32 0.0, %v225
  %227 = vmatprep.mubr.bf16.mxu0 0
  %228 = vmatmul.mubr.bf16.gmra.mxu0 %v151
  %v229 = vpop.f32.mrf.mxu0
  %v230 = vadd.f32 0.0, %v229
  %v231 = vpop.f32.mrf.mxu0
  %v232 = vadd.f32 0.0, %v231
  %v233 = vpop.f32.mrf.mxu0
  %v234 = vadd.f32 0.0, %v233
  %v235 = vpop.f32.mrf.mxu0
  %v236 = vadd.f32 0.0, %v235
  %237 = vmatprep.mubr.bf16.mxu0 0
  %238 = vmatmul.mubr.bf16.gmra.mxu0 %v154
  %v239 = vpop.f32.mrf.mxu0
  %v240 = vadd.f32 0.0, %v239
  %v241 = vpop.f32.mrf.mxu0
  %v242 = vadd.f32 0.0, %v241
  %v243 = vpop.f32.mrf.mxu0
  %v244 = vadd.f32 0.0, %v243
  %v245 = vpop.f32.mrf.mxu0
  %v246 = vadd.f32 0.0, %v245
  %247 = vmatprep.mubr.bf16.mxu0 0
  %248 = vmatmul.mubr.bf16.gmra.mxu0 %v157
  %v249 = vpop.f32.mrf.mxu0
  %v250 = vadd.f32 0.0, %v249
  %v251 = vpop.f32.mrf.mxu0
  %v252 = vadd.f32 0.0, %v251
  %v253 = vpop.f32.mrf.mxu0
  %v254 = vadd.f32 0.0, %v253
  %v255 = vpop.f32.mrf.mxu0
  %v256 = vadd.f32 0.0, %v255
  %257 = vmatprep.mubr.bf16.mxu0 0
  %258 = vmatmul.mubr.bf16.gmra.mxu0 %v160
  %v259 = vpop.f32.mrf.mxu0
  %v260 = vadd.f32 0.0, %v259
  %v261 = vpop.f32.mrf.mxu0
  %v262 = vadd.f32 0.0, %v261
  %v263 = vpop.f32.mrf.mxu0
  %v264 = vadd.f32 0.0, %v263
  %v265 = vpop.f32.mrf.mxu0
  %v266 = vadd.f32 0.0, %v265
  %267 = vmatprep.mubr.bf16.mxu0 0
  %268 = vmatmul.mubr.bf16.gmra.mxu0 %v163
  %v269 = vpop.f32.mrf.mxu0
  %v270 = vadd.f32 0.0, %v269
  %v271 = vpop.f32.mrf.mxu0
  %v272 = vadd.f32 0.0, %v271
  %v273 = vpop.f32.mrf.mxu0
  %v274 = vadd.f32 0.0, %v273
  %v275 = vpop.f32.mrf.mxu0
  %v276 = vadd.f32 0.0, %v275
  %277 = vdwg.mxu0
  %278 = vmatprep.subr.bf16.mxu0 0
  %279 = vmatpush1.bf16.msra.mxu0 0
  %280 = vmatprep.subr.bf16.mxu0 0
  %281 = vmatpush1.bf16.msra.mxu0 0
  %282 = vmatprep.subr.bf16.mxu0 0
  %283 = vmatpush1.bf16.msra.mxu0 0
  %284 = vmatprep.subr.bf16.mxu0 0
  %285 = vmatpush1.bf16.msra.mxu0 0
  %286 = vmatprep.subr.bf16.mxu0 0
  %287 = vmatpush1.bf16.msra.mxu0 0
  %288 = vmatprep.subr.bf16.mxu0 0
  %289 = vmatpush1.bf16.msra.mxu0 0
  %290 = vmatprep.subr.bf16.mxu0 %v131
  %291 = vmatpush1.bf16.msra.mxu0 %v130
  %292 = vmatprep.subr.bf16.mxu0 %v127
  %293 = vmatpush1.bf16.msra.mxu0 %v126
  %294 = vmatprep.subr.bf16.mxu0 0
  %295 = vmatpush2.bf16.msra.mxu0 0
  %296 = vmatprep.subr.bf16.mxu0 0
  %297 = vmatpush2.bf16.msra.mxu0 0
  %298 = vmatprep.subr.bf16.mxu0 0
  %299 = vmatpush2.bf16.msra.mxu0 0
  %300 = vmatprep.subr.bf16.mxu0 0
  %301 = vmatpush2.bf16.msra.mxu0 0
  %302 = vmatprep.subr.bf16.mxu0 0
  %303 = vmatpush2.bf16.msra.mxu0 0
  %304 = vmatprep.subr.bf16.mxu0 0
  %305 = vmatpush2.bf16.msra.mxu0 0
  %306 = vmatprep.subr.bf16.mxu0 0
  %307 = vmatpush2.bf16.msra.mxu0 0
  %308 = vmatprep.subr.bf16.mxu0 0
  %309 = vmatpush2.bf16.msra.mxu0 0
  %310 = vmatprep.mubr.bf16.mxu0 0
  %311 = vmatmul.mubr.bf16.gmra.mxu0 %v142
  %v312 = vpop.f32.mrf.mxu0
  %v313 = vadd.f32 0.0, %v312
  %v314 = vpop.f32.mrf.mxu0
  %v315 = vadd.f32 0.0, %v314
  %v316 = vpop.f32.mrf.mxu0
  %v317 = vadd.f32 0.0, %v316
  %v318 = vpop.f32.mrf.mxu0
  %v319 = vadd.f32 0.0, %v318
  %320 = vmatprep.mubr.bf16.mxu0 0
  %321 = vmatmul.mubr.bf16.gmra.mxu0 %v145
  %v322 = vpop.f32.mrf.mxu0
  %v323 = vadd.f32 0.0, %v322
  %v324 = vpop.f32.mrf.mxu0
  %v325 = vadd.f32 0.0, %v324
  %v326 = vpop.f32.mrf.mxu0
  %v327 = vadd.f32 0.0, %v326
  %v328 = vpop.f32.mrf.mxu0
  %v329 = vadd.f32 0.0, %v328
  %330 = vmatprep.mubr.bf16.mxu0 0
  %331 = vmatmul.mubr.bf16.gmra.mxu0 %v148
  %v332 = vpop.f32.mrf.mxu0
  %v333 = vadd.f32 0.0, %v332
  %v334 = vpop.f32.mrf.mxu0
  %v335 = vadd.f32 0.0, %v334
  %v336 = vpop.f32.mrf.mxu0
  %v337 = vadd.f32 0.0, %v336
  %v338 = vpop.f32.mrf.mxu0
  %v339 = vadd.f32 0.0, %v338
  %340 = vmatprep.mubr.bf16.mxu0 0
  %341 = vmatmul.mubr.bf16.gmra.mxu0 %v151
  %v342 = vpop.f32.mrf.mxu0
  %v343 = vadd.f32 0.0, %v342
  %v344 = vpop.f32.mrf.mxu0
  %v345 = vadd.f32 0.0, %v344
  %v346 = vpop.f32.mrf.mxu0
  %v347 = vadd.f32 0.0, %v346
  %v348 = vpop.f32.mrf.mxu0
  %v349 = vadd.f32 0.0, %v348
  %350 = vmatprep.mubr.bf16.mxu0 0
  %351 = vmatmul.mubr.bf16.gmra.mxu0 %v154
  %v352 = vpop.f32.mrf.mxu0
  %v353 = vadd.f32 0.0, %v352
  %v354 = vpop.f32.mrf.mxu0
  %v355 = vadd.f32 0.0, %v354
  %v356 = vpop.f32.mrf.mxu0
  %v357 = vadd.f32 0.0, %v356
  %v358 = vpop.f32.mrf.mxu0
  %v359 = vadd.f32 0.0, %v358
  %360 = vmatprep.mubr.bf16.mxu0 0
  %361 = vmatmul.mubr.bf16.gmra.mxu0 %v157
  %v362 = vpop.f32.mrf.mxu0
  %v363 = vadd.f32 0.0, %v362
  %v364 = vpop.f32.mrf.mxu0
  %v365 = vadd.f32 0.0, %v364
  %v366 = vpop.f32.mrf.mxu0
  %v367 = vadd.f32 0.0, %v366
  %v368 = vpop.f32.mrf.mxu0
  %v369 = vadd.f32 0.0, %v368
  %370 = vmatprep.mubr.bf16.mxu0 0
  %371 = vmatmul.mubr.bf16.gmra.mxu0 %v160
  %v372 = vpop.f32.mrf.mxu0
  %v373 = vadd.f32 0.0, %v372
  %v374 = vpop.f32.mrf.mxu0
  %v375 = vadd.f32 0.0, %v374
  %v376 = vpop.f32.mrf.mxu0
  %v377 = vadd.f32 0.0, %v376
  %v378 = vpop.f32.mrf.mxu0
  %v379 = vadd.f32 0.0, %v378
  %380 = vmatprep.mubr.bf16.mxu0 0
  %381 = vmatmul.mubr.bf16.gmra.mxu0 %v163
  %v382 = vpop.f32.mrf.mxu0
  %v383 = vadd.f32 0.0, %v382
  %v384 = vpop.f32.mrf.mxu0
  %v385 = vadd.f32 0.0, %v384
  %v386 = vpop.f32.mrf.mxu0
  %v387 = vadd.f32 0.0, %v386
  %v388 = vpop.f32.mrf.mxu0
  %v389 = vadd.f32 0.0, %v388
  %390 = vdwg.mxu0
  %v391 = vxor.u32 %v200, 2147483648
  %v392 = vxor.u32 %v202, 2147483648
  %v393 = vxor.u32 %v204, 2147483648
  %v394 = vxor.u32 %v206, 2147483648
  %v395 = vxor.u32 %v210, 2147483648
  %v396 = vxor.u32 %v212, 2147483648
  %v397 = vxor.u32 %v214, 2147483648
  %v398 = vxor.u32 %v216, 2147483648
  %v399 = vxor.u32 %v220, 2147483648
  %v400 = vxor.u32 %v222, 2147483648
  %v401 = vxor.u32 %v224, 2147483648
  %v402 = vxor.u32 %v226, 2147483648
  %v403 = vxor.u32 %v230, 2147483648
  %v404 = vxor.u32 %v232, 2147483648
  %v405 = vxor.u32 %v234, 2147483648
  %v406 = vxor.u32 %v236, 2147483648
  %v407 = vxor.u32 %v240, 2147483648
  %v408 = vxor.u32 %v242, 2147483648
  %v409 = vxor.u32 %v244, 2147483648
  %v410 = vxor.u32 %v246, 2147483648
  %v411 = vxor.u32 %v250, 2147483648
  %v412 = vxor.u32 %v252, 2147483648
  %v413 = vxor.u32 %v254, 2147483648
  %v414 = vxor.u32 %v256, 2147483648
  %v415 = vxor.u32 %v260, 2147483648
  %v416 = vxor.u32 %v262, 2147483648
  %v417 = vxor.u32 %v264, 2147483648
  %v418 = vxor.u32 %v266, 2147483648
  %v419 = vxor.u32 %v270, 2147483648
  %v420 = vxor.u32 %v272, 2147483648
  %v421 = vxor.u32 %v274, 2147483648
  %v422 = vxor.u32 %v276, 2147483648
  %v423 = vmul.f32 %v391, 1.442695
  %v424 = vpow.pop %v423
  %v425 = vmul.f32 %v392, 1.442695
  %v426 = vpow.pop %v425
  %v427 = vmul.f32 %v393, 1.442695
  %v428 = vpow.pop %v427
  %v429 = vmul.f32 %v394, 1.442695
  %v430 = vpow.pop %v429
  %v431 = vmul.f32 %v395, 1.442695
  %v432 = vpow.pop %v431
  %v433 = vmul.f32 %v396, 1.442695
  %v434 = vpow.pop %v433
  %v435 = vmul.f32 %v397, 1.442695
  %v436 = vpow.pop %v435
  %v437 = vmul.f32 %v398, 1.442695
  %v438 = vpow.pop %v437
  %v439 = vmul.f32 %v399, 1.442695
  %v440 = vpow.pop %v439
  %v441 = vmul.f32 %v400, 1.442695
  %v442 = vpow.pop %v441
  %v443 = vmul.f32 %v401, 1.442695
  %v444 = vpow.pop %v443
  %v445 = vmul.f32 %v402, 1.442695
  %v446 = vpow.pop %v445
  %v447 = vmul.f32 %v403, 1.442695
  %v448 = vpow.pop %v447
  %v449 = vmul.f32 %v404, 1.442695
  %v450 = vpow.pop %v449
  %v451 = vmul.f32 %v405, 1.442695
  %v452 = vpow.pop %v451
  %v453 = vmul.f32 %v406, 1.442695
  %v454 = vpow.pop %v453
  %v455 = vmul.f32 %v407, 1.442695
  %v456 = vpow.pop %v455
  %v457 = vmul.f32 %v408, 1.442695
  %v458 = vpow.pop %v457
  %v459 = vmul.f32 %v409, 1.442695
  %v460 = vpow.pop %v459
  %v461 = vmul.f32 %v410, 1.442695
  %v462 = vpow.pop %v461
  %v463 = vmul.f32 %v411, 1.442695
  %v464 = vpow.pop %v463
  %v465 = vmul.f32 %v412, 1.442695
  %v466 = vpow.pop %v465
  %v467 = vmul.f32 %v413, 1.442695
  %v468 = vpow.pop %v467
  %v469 = vmul.f32 %v414, 1.442695
  %v470 = vpow.pop %v469
  %v471 = vmul.f32 %v415, 1.442695
  %v472 = vpow.pop %v471
  %v473 = vmul.f32 %v416, 1.442695
  %v474 = vpow.pop %v473
  %v475 = vmul.f32 %v417, 1.442695
  %v476 = vpow.pop %v475
  %v477 = vmul.f32 %v418, 1.442695
  %v478 = vpow.pop %v477
  %v479 = vmul.f32 %v419, 1.442695
  %v480 = vpow.pop %v479
  %v481 = vmul.f32 %v420, 1.442695
  %v482 = vpow.pop %v481
  %v483 = vmul.f32 %v421, 1.442695
  %v484 = vpow.pop %v483
  %v485 = vmul.f32 %v422, 1.442695
  %v486 = vpow.pop %v485
  %v487 = vadd.f32 %v424, 1.0
  %v488 = vadd.f32 %v426, 1.0
  %v489 = vadd.f32 %v428, 1.0
  %v490 = vadd.f32 %v430, 1.0
  %v491 = vadd.f32 %v432, 1.0
  %v492 = vadd.f32 %v434, 1.0
  %v493 = vadd.f32 %v436, 1.0
  %v494 = vadd.f32 %v438, 1.0
  %v495 = vadd.f32 %v440, 1.0
  %v496 = vadd.f32 %v442, 1.0
  %v497 = vadd.f32 %v444, 1.0
  %v498 = vadd.f32 %v446, 1.0
  %v499 = vadd.f32 %v448, 1.0
  %v500 = vadd.f32 %v450, 1.0
  %v501 = vadd.f32 %v452, 1.0
  %v502 = vadd.f32 %v454, 1.0
  %v503 = vadd.f32 %v456, 1.0
  %v504 = vadd.f32 %v458, 1.0
  %v505 = vadd.f32 %v460, 1.0
  %v506 = vadd.f32 %v462, 1.0
  %v507 = vadd.f32 %v464, 1.0
  %v508 = vadd.f32 %v466, 1.0
  %v509 = vadd.f32 %v468, 1.0
  %v510 = vadd.f32 %v470, 1.0
  %v511 = vadd.f32 %v472, 1.0
  %v512 = vadd.f32 %v474, 1.0
  %v513 = vadd.f32 %v476, 1.0
  %v514 = vadd.f32 %v478, 1.0
  %v515 = vadd.f32 %v480, 1.0
  %v516 = vadd.f32 %v482, 1.0
  %v517 = vadd.f32 %v484, 1.0
  %v518 = vadd.f32 %v486, 1.0
  %v519 = vrcp.pop %v487
  %v520 = vmul.f32 1.0, %v519
  %v521 = vrcp.pop %v488
  %v522 = vmul.f32 1.0, %v521
  %v523 = vrcp.pop %v489
  %v524 = vmul.f32 1.0, %v523
  %v525 = vrcp.pop %v490
  %v526 = vmul.f32 1.0, %v525
  %v527 = vrcp.pop %v491
  %v528 = vmul.f32 1.0, %v527
  %v529 = vrcp.pop %v492
  %v530 = vmul.f32 1.0, %v529
  %v531 = vrcp.pop %v493
  %v532 = vmul.f32 1.0, %v531
  %v533 = vrcp.pop %v494
  %v534 = vmul.f32 1.0, %v533
  %v535 = vrcp.pop %v495
  %v536 = vmul.f32 1.0, %v535
  %v537 = vrcp.pop %v496
  %v538 = vmul.f32 1.0, %v537
  %v539 = vrcp.pop %v497
  %v540 = vmul.f32 1.0, %v539
  %v541 = vrcp.pop %v498
  %v542 = vmul.f32 1.0, %v541
  %v543 = vrcp.pop %v499
  %v544 = vmul.f32 1.0, %v543
  %v545 = vrcp.pop %v500
  %v546 = vmul.f32 1.0, %v545
  %v547 = vrcp.pop %v501
  %v548 = vmul.f32 1.0, %v547
  %v549 = vrcp.pop %v502
  %v550 = vmul.f32 1.0, %v549
  %v551 = vrcp.pop %v503
  %v552 = vmul.f32 1.0, %v551
  %v553 = vrcp.pop %v504
  %v554 = vmul.f32 1.0, %v553
  %v555 = vrcp.pop %v505
  %v556 = vmul.f32 1.0, %v555
  %v557 = vrcp.pop %v506
  %v558 = vmul.f32 1.0, %v557
  %v559 = vrcp.pop %v507
  %v560 = vmul.f32 1.0, %v559
  %v561 = vrcp.pop %v508
  %v562 = vmul.f32 1.0, %v561
  %v563 = vrcp.pop %v509
  %v564 = vmul.f32 1.0, %v563
  %v565 = vrcp.pop %v510
  %v566 = vmul.f32 1.0, %v565
  %v567 = vrcp.pop %v511
  %v568 = vmul.f32 1.0, %v567
  %v569 = vrcp.pop %v512
  %v570 = vmul.f32 1.0, %v569
  %v571 = vrcp.pop %v513
  %v572 = vmul.f32 1.0, %v571
  %v573 = vrcp.pop %v514
  %v574 = vmul.f32 1.0, %v573
  %v575 = vrcp.pop %v515
  %v576 = vmul.f32 1.0, %v575
  %v577 = vrcp.pop %v516
  %v578 = vmul.f32 1.0, %v577
  %v579 = vrcp.pop %v517
  %v580 = vmul.f32 1.0, %v579
  %v581 = vrcp.pop %v518
  %v582 = vmul.f32 1.0, %v581
  %v583 = vmul.f32 %v200, %v520
  %v584 = vmul.f32 %v202, %v522
  %v585 = vmul.f32 %v204, %v524
  %v586 = vmul.f32 %v206, %v526
  %v587 = vmul.f32 %v210, %v528
  %v588 = vmul.f32 %v212, %v530
  %v589 = vmul.f32 %v214, %v532
  %v590 = vmul.f32 %v216, %v534
  %v591 = vmul.f32 %v220, %v536
  %v592 = vmul.f32 %v222, %v538
  %v593 = vmul.f32 %v224, %v540
  %v594 = vmul.f32 %v226, %v542
  %v595 = vmul.f32 %v230, %v544
  %v596 = vmul.f32 %v232, %v546
  %v597 = vmul.f32 %v234, %v548
  %v598 = vmul.f32 %v236, %v550
  %v599 = vmul.f32 %v240, %v552
  %v600 = vmul.f32 %v242, %v554
  %v601 = vmul.f32 %v244, %v556
  %v602 = vmul.f32 %v246, %v558
  %v603 = vmul.f32 %v250, %v560
  %v604 = vmul.f32 %v252, %v562
  %v605 = vmul.f32 %v254, %v564
  %v606 = vmul.f32 %v256, %v566
  %v607 = vmul.f32 %v260, %v568
  %v608 = vmul.f32 %v262, %v570
  %v609 = vmul.f32 %v264, %v572
  %v610 = vmul.f32 %v266, %v574
  %v611 = vmul.f32 %v270, %v576
  %v612 = vmul.f32 %v272, %v578
  %v613 = vmul.f32 %v274, %v580
  %v614 = vmul.f32 %v276, %v582
  %v615 = vmul.f32 %v583, %v313
  %v616 = vmul.f32 %v584, %v315
  %v617 = vmul.f32 %v585, %v317
  %v618 = vmul.f32 %v586, %v319
  %v619 = vmul.f32 %v587, %v323
  %v620 = vmul.f32 %v588, %v325
  %v621 = vmul.f32 %v589, %v327
  %v622 = vmul.f32 %v590, %v329
  %v623 = vmul.f32 %v591, %v333
  %v624 = vmul.f32 %v592, %v335
  %v625 = vmul.f32 %v593, %v337
  %v626 = vmul.f32 %v594, %v339
  %v627 = vmul.f32 %v595, %v343
  %v628 = vmul.f32 %v596, %v345
  %v629 = vmul.f32 %v597, %v347
  %v630 = vmul.f32 %v598, %v349
  %v631 = vmul.f32 %v599, %v353
  %v632 = vmul.f32 %v600, %v355
  %v633 = vmul.f32 %v601, %v357
  %v634 = vmul.f32 %v602, %v359
  %v635 = vmul.f32 %v603, %v363
  %v636 = vmul.f32 %v604, %v365
  %v637 = vmul.f32 %v605, %v367
  %v638 = vmul.f32 %v606, %v369
  %v639 = vmul.f32 %v607, %v373
  %v640 = vmul.f32 %v608, %v375
  %v641 = vmul.f32 %v609, %v377
  %v642 = vmul.f32 %v610, %v379
  %v643 = vmul.f32 %v611, %v383
  %v644 = vmul.f32 %v612, %v385
  %v645 = vmul.f32 %v613, %v387
  %v646 = vmul.f32 %v614, %v389
  %v647 = vld [vmem:[#allocation2] sm:$0xff]
  %v648 = vld [vmem:[#allocation2 + $0x8] sm:$0xff]
  %v649 = vld [vmem:[#allocation2 + $0x10] sm:$0xff]
  %v650 = vld [vmem:[#allocation2 + $0x18] sm:$0xff]
  %v651 = vld [vmem:[#allocation2 + $0x20] sm:$0xff]
  %v652 = vld [vmem:[#allocation2 + $0x28] sm:$0xff]
  %v653 = vld [vmem:[#allocation2 + $0x30] sm:$0xff]
  %v654 = vld [vmem:[#allocation2 + $0x38] sm:$0xff]
  %v655 = vld [vmem:[#allocation2 + $0x40] sm:$0xff]
  %v656 = vld [vmem:[#allocation2 + $0x48] sm:$0xff]
  %v657 = vld [vmem:[#allocation2 + $0x50] sm:$0xff]
  %v658 = vld [vmem:[#allocation2 + $0x58] sm:$0xff]
  %v659 = vld [vmem:[#allocation2 + $0x60] sm:$0xff]
  %v660 = vld [vmem:[#allocation2 + $0x68] sm:$0xff]
  %v661 = vld [vmem:[#allocation2 + $0x70] sm:$0xff]
  %v662 = vld [vmem:[#allocation2 + $0x78] sm:$0xff]
  %v663 = vpack.c.bf16 %v617, %v615
  %v664 = vpack.c.bf16 %v618, %v616
  %v665 = vpack.c.bf16 %v621, %v619
  %v666 = vpack.c.bf16 %v622, %v620
  %v667 = vpack.c.bf16 %v625, %v623
  %v668 = vpack.c.bf16 %v626, %v624
  %v669 = vpack.c.bf16 %v629, %v627
  %v670 = vpack.c.bf16 %v630, %v628
  %v671 = vpack.c.bf16 %v633, %v631
  %v672 = vpack.c.bf16 %v634, %v632
  %v673 = vpack.c.bf16 %v637, %v635
  %v674 = vpack.c.bf16 %v638, %v636
  %v675 = vpack.c.bf16 %v641, %v639
  %v676 = vpack.c.bf16 %v642, %v640
  %v677 = vpack.c.bf16 %v645, %v643
  %v678 = vpack.c.bf16 %v646, %v644
  %v679 = vld [vmem:[%s2] sm:$0xf]
  %v680 = vld [vmem:[%s2 + $0x4] sm:$0xf]
  %v681 = vld [vmem:[%s2 + $0x8] sm:$0xf]
  %v682 = vld [vmem:[%s2 + $0xc] sm:$0xf]
  %v683 = vld [vmem:[%s2 + $0x10] sm:$0xf]
  %v684 = vld [vmem:[%s2 + $0x14] sm:$0xf]
  %v685 = vld [vmem:[%s2 + $0x18] sm:$0xf]
  %v686 = vld [vmem:[%s2 + $0x1c] sm:$0xf]
  %v687 = vld [vmem:[%s2 + $0x20] sm:$0xf]
  %v688 = vld [vmem:[%s2 + $0x24] sm:$0xf]
  %v689 = vld [vmem:[%s2 + $0x28] sm:$0xf]
  %v690 = vld [vmem:[%s2 + $0x2c] sm:$0xf]
  %v691 = vld [vmem:[%s2 + $0x30] sm:$0xf]
  %v692 = vld [vmem:[%s2 + $0x34] sm:$0xf]
  %v693 = vld [vmem:[%s2 + $0x38] sm:$0xf]
  %v694 = vld [vmem:[%s2 + $0x3c] sm:$0xf]
  %v695 = vld [vmem:[%s2 + $0x40] sm:$0xf]
  %v696 = vld [vmem:[%s2 + $0x44] sm:$0xf]
  %v697 = vld [vmem:[%s2 + $0x48] sm:$0xf]
  %v698 = vld [vmem:[%s2 + $0x4c] sm:$0xf]
  %v699 = vld [vmem:[%s2 + $0x50] sm:$0xf]
  %v700 = vld [vmem:[%s2 + $0x54] sm:$0xf]
  %v701 = vld [vmem:[%s2 + $0x58] sm:$0xf]
  %v702 = vld [vmem:[%s2 + $0x5c] sm:$0xf]
  %v703 = vld [vmem:[%s2 + $0x60] sm:$0xf]
  %v704 = vld [vmem:[%s2 + $0x64] sm:$0xf]
  %v705 = vld [vmem:[%s2 + $0x68] sm:$0xf]
  %v706 = vld [vmem:[%s2 + $0x6c] sm:$0xf]
  %v707 = vld [vmem:[%s2 + $0x70] sm:$0xf]
  %v708 = vld [vmem:[%s2 + $0x74] sm:$0xf]
  %v709 = vld [vmem:[%s2 + $0x78] sm:$0xf]
  %v710 = vld [vmem:[%s2 + $0x7c] sm:$0xf]
  %v743 = vunpack.c.l.b16 %v679
  %v744 = vunpack.c.l.b16 %v680
  %v745 = vunpack.c.l.b16 %v681
  %v746 = vunpack.c.l.b16 %v682
  %v747 = vunpack.c.l.b16 %v683
  %v748 = vunpack.c.l.b16 %v684
  %v749 = vunpack.c.l.b16 %v685
  %v750 = vunpack.c.l.b16 %v686
  %v751 = vunpack.c.l.b16 %v687
  %v752 = vunpack.c.l.b16 %v688
  %v753 = vunpack.c.l.b16 %v689
  %v754 = vunpack.c.l.b16 %v690
  %v755 = vunpack.c.l.b16 %v691
  %v756 = vunpack.c.l.b16 %v692
  %v757 = vunpack.c.l.b16 %v693
  %v758 = vunpack.c.l.b16 %v694
  %v759 = vunpack.c.l.b16 %v695
  %v760 = vunpack.c.l.b16 %v696
  %v761 = vunpack.c.l.b16 %v697
  %v762 = vunpack.c.l.b16 %v698
  %v763 = vunpack.c.l.b16 %v699
  %v764 = vunpack.c.l.b16 %v700
  %v765 = vunpack.c.l.b16 %v701
  %v766 = vunpack.c.l.b16 %v702
  %v767 = vunpack.c.l.b16 %v703
  %v768 = vunpack.c.l.b16 %v704
  %v769 = vunpack.c.l.b16 %v705
  %v770 = vunpack.c.l.b16 %v706
  %v771 = vunpack.c.l.b16 %v707
  %v772 = vunpack.c.l.b16 %v708
  %v773 = vunpack.c.l.b16 %v709
  %v774 = vunpack.c.l.b16 %v710
  %v775 = vpack.c.b16 %v744, %v743
  %v776 = vpack.c.b16 %v746, %v745
  %v777 = vpack.c.b16 %v748, %v747
  %v778 = vpack.c.b16 %v750, %v749
  %v779 = vpack.c.b16 %v752, %v751
  %v780 = vpack.c.b16 %v754, %v753
  %v781 = vpack.c.b16 %v756, %v755
  %v782 = vpack.c.b16 %v758, %v757
  %v783 = vpack.c.b16 %v760, %v759
  %v784 = vpack.c.b16 %v762, %v761
  %v785 = vpack.c.b16 %v764, %v763
  %v786 = vpack.c.b16 %v766, %v765
  %v787 = vpack.c.b16 %v768, %v767
  %v788 = vpack.c.b16 %v770, %v769
  %v789 = vpack.c.b16 %v772, %v771
  %v790 = vpack.c.b16 %v774, %v773
  %807 = vmatprep.subr.bf16.mxu0 0
  %808 = vmatpush1.bf16.msra.mxu0 %v782
  %809 = vmatprep.subr.bf16.mxu0 0
  %810 = vmatpush1.bf16.msra.mxu0 %v781
  %811 = vmatprep.subr.bf16.mxu0 0
  %812 = vmatpush1.bf16.msra.mxu0 %v780
  %813 = vmatprep.subr.bf16.mxu0 0
  %814 = vmatpush1.bf16.msra.mxu0 %v779
  %815 = vmatprep.subr.bf16.mxu0 0
  %816 = vmatpush1.bf16.msra.mxu0 %v778
  %817 = vmatprep.subr.bf16.mxu0 0
  %818 = vmatpush1.bf16.msra.mxu0 %v777
  %819 = vmatprep.subr.bf16.mxu0 0
  %820 = vmatpush1.bf16.msra.mxu0 %v776
  %821 = vmatprep.subr.bf16.mxu0 0
  %822 = vmatpush1.bf16.msra.mxu0 %v775
  %823 = vmatprep.subr.bf16.mxu0 0
  %824 = vmatpush2.bf16.msra.mxu0 %v790
  %825 = vmatprep.subr.bf16.mxu0 0
  %826 = vmatpush2.bf16.msra.mxu0 %v789
  %827 = vmatprep.subr.bf16.mxu0 0
  %828 = vmatpush2.bf16.msra.mxu0 %v788
  %829 = vmatprep.subr.bf16.mxu0 0
  %830 = vmatpush2.bf16.msra.mxu0 %v787
  %831 = vmatprep.subr.bf16.mxu0 0
  %832 = vmatpush2.bf16.msra.mxu0 %v786
  %833 = vmatprep.subr.bf16.mxu0 0
  %834 = vmatpush2.bf16.msra.mxu0 %v785
  %835 = vmatprep.subr.bf16.mxu0 0
  %836 = vmatpush2.bf16.msra.mxu0 %v784
  %837 = vmatprep.subr.bf16.mxu0 0
  %838 = vmatpush2.bf16.msra.mxu0 %v783
  %839 = vmatprep.mubr.bf16.mxu0 %v664
  %840 = vmatmul.mubr.bf16.gmra.mxu0 %v663
  %v841 = vpop.f32.mrf.mxu0
  %v842 = vadd.f32 0.0, %v841
  %v843 = vpop.f32.mrf.mxu0
  %v844 = vpop.f32.mrf.mxu0
  %v845 = vadd.f32 0.0, %v844
  %v846 = vpop.f32.mrf.mxu0
  %847 = vmatprep.mubr.bf16.mxu0 %v666
  %848 = vmatmul.mubr.bf16.gmra.mxu0 %v665
  %v849 = vpop.f32.mrf.mxu0
  %v850 = vadd.f32 0.0, %v849
  %v851 = vpop.f32.mrf.mxu0
  %v852 = vpop.f32.mrf.mxu0
  %v853 = vadd.f32 0.0, %v852
  %v854 = vpop.f32.mrf.mxu0
  %855 = vmatprep.mubr.bf16.mxu0 %v668
  %856 = vmatmul.mubr.bf16.gmra.mxu0 %v667
  %v857 = vpop.f32.mrf.mxu0
  %v858 = vadd.f32 0.0, %v857
  %v859 = vpop.f32.mrf.mxu0
  %v860 = vpop.f32.mrf.mxu0
  %v861 = vadd.f32 0.0, %v860
  %v862 = vpop.f32.mrf.mxu0
  %863 = vmatprep.mubr.bf16.mxu0 %v670
  %864 = vmatmul.mubr.bf16.gmra.mxu0 %v669
  %v865 = vpop.f32.mrf.mxu0
  %v866 = vadd.f32 0.0, %v865
  %v867 = vpop.f32.mrf.mxu0
  %v868 = vpop.f32.mrf.mxu0
  %v869 = vadd.f32 0.0, %v868
  %v870 = vpop.f32.mrf.mxu0
  %871 = vmatprep.mubr.bf16.mxu0 %v672
  %872 = vmatmul.mubr.bf16.gmra.mxu0 %v671
  %v873 = vpop.f32.mrf.mxu0
  %v874 = vadd.f32 0.0, %v873
  %v875 = vpop.f32.mrf.mxu0
  %v876 = vpop.f32.mrf.mxu0
  %v877 = vadd.f32 0.0, %v876
  %v878 = vpop.f32.mrf.mxu0
  %879 = vmatprep.mubr.bf16.mxu0 %v674
  %880 = vmatmul.mubr.bf16.gmra.mxu0 %v673
  %v881 = vpop.f32.mrf.mxu0
  %v882 = vadd.f32 0.0, %v881
  %v883 = vpop.f32.mrf.mxu0
  %v884 = vpop.f32.mrf.mxu0
  %v885 = vadd.f32 0.0, %v884
  %v886 = vpop.f32.mrf.mxu0
  %887 = vmatprep.mubr.bf16.mxu0 %v676
  %888 = vmatmul.mubr.bf16.gmra.mxu0 %v675
  %v889 = vpop.f32.mrf.mxu0
  %v890 = vadd.f32 0.0, %v889
  %v891 = vpop.f32.mrf.mxu0
  %v892 = vpop.f32.mrf.mxu0
  %v893 = vadd.f32 0.0, %v892
  %v894 = vpop.f32.mrf.mxu0
  %895 = vmatprep.mubr.bf16.mxu0 %v678
  %896 = vmatmul.mubr.bf16.gmra.mxu0 %v677
  %v897 = vpop.f32.mrf.mxu0
  %v898 = vadd.f32 0.0, %v897
  %v899 = vpop.f32.mrf.mxu0
  %v900 = vpop.f32.mrf.mxu0
  %v901 = vadd.f32 0.0, %v900
  %v902 = vpop.f32.mrf.mxu0
  %903 = vdwg.mxu0
  %v904 = vadd.f32 %v647, %v842
  %v905 = vadd.f32 %v648, %v845
  %v906 = vadd.f32 %v649, %v850
  %v907 = vadd.f32 %v650, %v853
  %v908 = vadd.f32 %v651, %v858
  %v909 = vadd.f32 %v652, %v861
  %v910 = vadd.f32 %v653, %v866
  %v911 = vadd.f32 %v654, %v869
  %v912 = vadd.f32 %v655, %v874
  %v913 = vadd.f32 %v656, %v877
  %v914 = vadd.f32 %v657, %v882
  %v915 = vadd.f32 %v658, %v885
  %v916 = vadd.f32 %v659, %v890
  %v917 = vadd.f32 %v660, %v893
  %v918 = vadd.f32 %v661, %v898
  %v919 = vadd.f32 %v662, %v901
  %920 = vst.msk [vmem:[#allocation2] sm:$0xff] %vm140, %v904
  %921 = vst.msk [vmem:[#allocation2 + $0x8] sm:$0xff] %vm140, %v905
  %922 = vst.msk [vmem:[#allocation2 + $0x10] sm:$0xff] %vm140, %v906
  %923 = vst.msk [vmem:[#allocation2 + $0x18] sm:$0xff] %vm140, %v907
  %924 = vst.msk [vmem:[#allocation2 + $0x20] sm:$0xff] %vm140, %v908
  %925 = vst.msk [vmem:[#allocation2 + $0x28] sm:$0xff] %vm140, %v909
  %926 = vst.msk [vmem:[#allocation2 + $0x30] sm:$0xff] %vm140, %v910
  %927 = vst.msk [vmem:[#allocation2 + $0x38] sm:$0xff] %vm140, %v911
  %928 = vst.msk [vmem:[#allocation2 + $0x40] sm:$0xff] %vm140, %v912
  %929 = vst.msk [vmem:[#allocation2 + $0x48] sm:$0xff] %vm140, %v913
  %930 = vst.msk [vmem:[#allocation2 + $0x50] sm:$0xff] %vm140, %v914
  %931 = vst.msk [vmem:[#allocation2 + $0x58] sm:$0xff] %vm140, %v915
  %932 = vst.msk [vmem:[#allocation2 + $0x60] sm:$0xff] %vm140, %v916
  %933 = vst.msk [vmem:[#allocation2 + $0x68] sm:$0xff] %vm140, %v917
  %934 = vst.msk [vmem:[#allocation2 + $0x70] sm:$0xff] %vm140, %v918
  %935 = vst.msk [vmem:[#allocation2 + $0x78] sm:$0xff] %vm140, %v919
  // Predicated region
  $region18: #{tpu_custom_call.1} parent=0 // pred_check
    %p936 = pneg %p15
  $region19: #{tpu_custom_call.1} parent=0 // pred_check_branch
    %938 = sbr.rel (%p936) target = $region21
  $region20: #{tpu_custom_call.1} parent=0 // pred_region
    %v939 = vld [vmem:[#allocation2] sm:$0xff]
    %v940 = vld [vmem:[#allocation2 + $0x8] sm:$0xff]
    %v941 = vld [vmem:[#allocation2 + $0x10] sm:$0xff]
    %v942 = vld [vmem:[#allocation2 + $0x18] sm:$0xff]
    %v943 = vld [vmem:[#allocation2 + $0x20] sm:$0xff]
    %v944 = vld [vmem:[#allocation2 + $0x28] sm:$0xff]
    %v945 = vld [vmem:[#allocation2 + $0x30] sm:$0xff]
    %v946 = vld [vmem:[#allocation2 + $0x38] sm:$0xff]
    %v947 = vld [vmem:[#allocation2 + $0x40] sm:$0xff]
    %v948 = vld [vmem:[#allocation2 + $0x48] sm:$0xff]
    %v949 = vld [vmem:[#allocation2 + $0x50] sm:$0xff]
    %v950 = vld [vmem:[#allocation2 + $0x58] sm:$0xff]
    %v951 = vld [vmem:[#allocation2 + $0x60] sm:$0xff]
    %v952 = vld [vmem:[#allocation2 + $0x68] sm:$0xff]
    %v953 = vld [vmem:[#allocation2 + $0x70] sm:$0xff]
    %v954 = vld [vmem:[#allocation2 + $0x78] sm:$0xff]
    %v955 = vpack.c.bf16 %v940, %v939
    %v956 = vpack.c.bf16 %v942, %v941
    %v957 = vpack.c.bf16 %v944, %v943
    %v958 = vpack.c.bf16 %v946, %v945
    %v959 = vpack.c.bf16 %v948, %v947
    %v960 = vpack.c.bf16 %v950, %v949
    %v961 = vpack.c.bf16 %v952, %v951
    %v962 = vpack.c.bf16 %v954, %v953
    %v971 = vunpack.c.l.b16 %v955
    %v972 = vunpack.c.h.b16 %v955
    %v973 = vunpack.c.l.b16 %v956
    %v974 = vunpack.c.h.b16 %v956
    %v975 = vunpack.c.l.b16 %v957
    %v976 = vunpack.c.h.b16 %v957
    %v977 = vunpack.c.l.b16 %v958
    %v978 = vunpack.c.h.b16 %v958
    %v979 = vunpack.c.l.b16 %v959
    %v980 = vunpack.c.h.b16 %v959
    %v981 = vunpack.c.l.b16 %v960
    %v982 = vunpack.c.h.b16 %v960
    %v983 = vunpack.c.l.b16 %v961
    %v984 = vunpack.c.h.b16 %v961
    %v985 = vunpack.c.l.b16 %v962
    %v986 = vunpack.c.h.b16 %v962
    %v987 = vpack.c.b16 %v971, %v971
    %v988 = vpack.c.b16 %v972, %v972
    %v989 = vpack.c.b16 %v973, %v973
    %v990 = vpack.c.b16 %v974, %v974
    %v991 = vpack.c.b16 %v975, %v975
    %v992 = vpack.c.b16 %v976, %v976
    %v993 = vpack.c.b16 %v977, %v977
    %v994 = vpack.c.b16 %v978, %v978
    %v995 = vpack.c.b16 %v979, %v979
    %v996 = vpack.c.b16 %v980, %v980
    %v997 = vpack.c.b16 %v981, %v981
    %v998 = vpack.c.b16 %v982, %v982
    %v999 = vpack.c.b16 %v983, %v983
    %v1000 = vpack.c.b16 %v984, %v984
    %v1001 = vpack.c.b16 %v985, %v985
    %v1002 = vpack.c.b16 %v986, %v986
    %vm1019 = vcmask 257024
    %1020 = vst.msk [vmem:[%s3] sm:$0xf] %vm1019, %v987
    %1021 = vst.msk [vmem:[%s3 + $0x4] sm:$0xf] %vm1019, %v988
    %1022 = vst.msk [vmem:[%s3 + $0x8] sm:$0xf] %vm1019, %v989
    %1023 = vst.msk [vmem:[%s3 + $0xc] sm:$0xf] %vm1019, %v990
    %1024 = vst.msk [vmem:[%s3 + $0x10] sm:$0xf] %vm1019, %v991
    %1025 = vst.msk [vmem:[%s3 + $0x14] sm:$0xf] %vm1019, %v992
    %1026 = vst.msk [vmem:[%s3 + $0x18] sm:$0xf] %vm1019, %v993
    %1027 = vst.msk [vmem:[%s3 + $0x1c] sm:$0xf] %vm1019, %v994
    %1028 = vst.msk [vmem:[%s3 + $0x20] sm:$0xf] %vm1019, %v995
    %1029 = vst.msk [vmem:[%s3 + $0x24] sm:$0xf] %vm1019, %v996
    %1030 = vst.msk [vmem:[%s3 + $0x28] sm:$0xf] %vm1019, %v997
    %1031 = vst.msk [vmem:[%s3 + $0x2c] sm:$0xf] %vm1019, %v998
    %1032 = vst.msk [vmem:[%s3 + $0x30] sm:$0xf] %vm1019, %v999
    %1033 = vst.msk [vmem:[%s3 + $0x34] sm:$0xf] %vm1019, %v1000
    %1034 = vst.msk [vmem:[%s3 + $0x38] sm:$0xf] %vm1019, %v1001
    %1035 = vst.msk [vmem:[%s3 + $0x3c] sm:$0xf] %vm1019, %v1002
  $region21: #{tpu_custom_call.1} parent=0 // pred_fallthru
    _
  // Predicated region
  $region22: #{tpu_custom_call.1} parent=0 // pred_check
    _
  $region23: #{tpu_custom_call.1} parent=0 // pred_check_branch
    %1037 = sbr.rel (0) target = $region25
  $region24: #{tpu_custom_call.1} parent=0 // pred_region
    _
  $region25: #{tpu_custom_call.1} parent=0 // pred_fallthru
    _
  // Predicated region
  $region26: #{tpu_custom_call.1} parent=0 // pred_check
    _
  $region27: #{tpu_custom_call.1} parent=0 // pred_check_branch
    %1039 = sbr.rel (0) target = $region29
  $region28: #{tpu_custom_call.1} parent=0 // pred_region
    _
  $region29: #{tpu_custom_call.1} parent=0 // pred_fallthru
    _

</llo_original>
